<compile_context>
chip_gen: v7x
topology: tpu7x:2x2x1
jax: 0.10.0
libtpu: 0.0.40
codegen_flags: <defaults>
</compile_context>

<pallas_src>
import numpy as np
import jax
import jax.numpy as jnp
from jax import lax
from jax.experimental import pallas as pl
from jax.experimental.pallas import tpu as pltpu


# ---------------------------------------------------------------------------
# fill_kernel: parameter glue (ReLU-scaled copy of static kernel regions).
# Region bounds are static host ints, reproducing the PyTorch loop semantics.
# ---------------------------------------------------------------------------
def fill_kernel(base_kernel, regions, grating_spectrum):
    filled = jnp.zeros_like(base_kernel)
    for i in range(regions.shape[0]):
        x0, x1 = int(regions[i, 0, 0]), int(regions[i, 0, 1])
        y0, y1 = int(regions[i, 1, 0]), int(regions[i, 1, 1])
        scale = jax.nn.relu(grating_spectrum[i])[None, :, None, None]   # (1, C, 1, 1)
        filled = filled.at[0:1, :, x0:x1, y0:y1].set(
            scale * base_kernel[0:1, :, x0:x1, y0:y1]
        )
    return filled


def _round_up(n, m):
    return ((n + m - 1) // m) * m


def _cdiv(a, b):
    return -(-a // b)


def _pick_row_tile(H, KX, KY, WS):
    """Row-tile height (multiple of 8) keeping the per-chunk live set under ~40 vregs."""
    h8 = _round_up(max(H, 1), 8)
    lane_tiles = WS // 128
    halo = _round_up(KX - 1, 8)
    for cand in (32, 24, 16, 8):
        if cand > h8:
            continue
        # KY partials + acc (of (cand, WS)) + xc/xu (of (cand+halo, WS))
        vregs = (KY + 1) * (cand // 8) * lane_tiles + 2 * ((cand + halo) // 8) * lane_tiles
        if vregs <= 40:
            return cand
    return 8


# ---------------------------------------------------------------------------
# Dispersion hot path.
#   out[b, i, j] = sum_{c,u,v} x[b, c, i+u-ph, j+v-pw] * k[c, u, v]   (zero outside)
# ---------------------------------------------------------------------------
def disperse_all_orders(x, kernel, *, min_grid_steps=2):
    """x: (B, C, H, W); kernel: (1, C, KX, KY) -> (B, 1, H, W)."""
    B, C, H, W = x.shape
    _, Ck, KX, KY = kernel.shape
    assert Ck == C and B >= 1

    ph, pw = (KX - 1) // 2, (KY - 1) // 2       # 'same' padding (matches XLA/PyTorch SAME)

    # ---- lane packing geometry -------------------------------------------------
    g_lane = max(pw, KY - 1 - pw)               # per-image zero gutter on the lane axis
    SW = W + g_lane                             # packed slot width per image
    WS = _round_up(SW, 128)                     # lane-tile width of the packed slab
    # Keep >=2 grid steps when B allows it (v7x dual-TC + DMA/compute overlap), but
    # never exceed the maximum lane packing.
    P = min(WS // SW, max(1, _cdiv(B, max(1, min_grid_steps))))
    G = _cdiv(B, P)                             # packed groups == grid steps

    # ---- row tiling geometry ---------------------------------------------------
    RT = _pick_row_tile(H, KX, KY, WS)          # row chunk (multiple of 8)
    H_pad = _round_up(H, RT)                    # padded output rows
    halo = _round_up(KX - 1, 8)                 # sublane halo (image sits at rows [ph, ph+H))
    HS = H_pad + halo                           # padded input rows
    CH = RT + halo                              # per-chunk load rows (chunk + halo)
    n_chunks = H_pad // RT

    # ---- pack the input in the wrapper (single XLA pad/transpose pass) ----------
    Bp = G * P
    xb = x
    if Bp > B:
        xb = jnp.pad(xb, ((0, Bp - B), (0, 0), (0, 0), (0, 0)))
    xb = xb.reshape(G, P, C, H, W)
    xb = jnp.pad(xb, ((0, 0), (0, 0), (0, 0), (0, 0), (0, SW - W)))     # per-image gutter
    xb = jnp.transpose(xb, (0, 2, 3, 1, 4)).reshape(G, C, H, P * SW)    # pack along lanes
    xb = jnp.pad(xb, ((0, 0), (0, 0), (ph, HS - H - ph), (0, WS - P * SW)))
    # xb: (G, C, HS, WS) -- full (8,128)-aligned slabs, zeros everywhere off-image.

    # Flat tap table for SMEM: index [c, u, v] -> c*KX*KY + u*KY + v.
    k_flat = kernel[0].astype(jnp.float32).reshape(C * KX * KY)

    def body(x_ref, k_ref, o_ref):
        # x_ref: (C, HS, WS) pre-padded/packed input slab (halos already zero).
        # k_ref: (C*KX*KY,) f32 in SMEM.  o_ref: (H_pad, WS) packed output.
        def row_chunk(t, carry):
            r0 = pl.multiple_of(t * RT, RT)                 # aligned chunk base
            parts = [jnp.zeros((RT, WS), jnp.float32) for _ in range(KY)]
            for c in range(C):
                # One aligned (CH, WS) load per channel per chunk (rows r0 .. r0+CH).
                xc = x_ref[c, pl.ds(r0, CH), :].astype(jnp.float32)
                for u in range(KX):
                    # xu[i, :] = xc[i + u, :]  (sublane roll on the XLU, then prefix slice)
                    xu = xc if u == 0 else pltpu.roll(xc, (CH - u) % CH, axis=0)
                    xu = xu[:RT]
                    base = c * KX * KY + u * KY
                    for v in range(KY):
                        parts[v] = parts[v] + xu * k_ref[base + v]   # scalar SMEM tap
            # Combine per-v partials with one lane roll each; gutters keep images apart.
            acc = jnp.zeros((RT, WS), jnp.float32)
            for v in range(KY):
                s = (pw - v) % WS
                pv = parts[v] if s == 0 else pltpu.roll(parts[v], s, axis=1)
                acc = acc + pv
            o_ref[pl.ds(r0, RT), :] = acc.astype(o_ref.dtype)        # lane-dense store
            return carry

        lax.fori_loop(0, n_chunks, row_chunk, 0, unroll=bool(n_chunks <= 4))

    # ---- VMEM budget (explicit, with v7x's 64 MiB physical in mind) -------------
    itemsize = jnp.dtype(x.dtype).itemsize
    in_block = C * HS * WS * itemsize
    out_block = H_pad * WS * itemsize
    vmem_need = 2 * (in_block + out_block)                  # double-buffered in + out
    vmem_limit = int(min(64 * 1024 * 1024, max(8 * 1024 * 1024, 2 * vmem_need)))

    out_packed = pl.pallas_call(
        body,
        out_shape=jax.ShapeDtypeStruct((G, H_pad, WS), x.dtype),
        grid_spec=pltpu.PrefetchScalarGridSpec(
            num_scalar_prefetch=0,
            grid=(G,),
            in_specs=[
                pl.BlockSpec((None, C, HS, WS), lambda g: (g, 0, 0, 0)),
                pl.BlockSpec(memory_space=pltpu.MemorySpace.SMEM),   # flat tap table
            ],
            out_specs=pl.BlockSpec((None, H_pad, WS), lambda g: (g, 0, 0)),
        ),
        compiler_params=pltpu.CompilerParams(
            dimension_semantics=("parallel",),
            vmem_limit_bytes=vmem_limit,
        ),
    )(xb, k_flat)

    # ---- single unpack pass (small arrays) --------------------------------------
    o = out_packed[:, :H, : P * SW].reshape(G, H, P, SW)[:, :, :, :W]
    o = jnp.transpose(o, (0, 2, 1, 3)).reshape(Bp, H, W)[:B]
    return o.reshape(B, 1, H, W)


def grating_modulation_learner_forward(x, base_kernel, regions, grating_spectrum,
                                       *, min_grid_steps=2):
    filled = fill_kernel(base_kernel, regions, grating_spectrum)
    return disperse_all_orders(x, filled, min_grid_steps=min_grid_steps)


if __name__ == "__main__":
    key = jax.random.PRNGKey(0)
    B, C, H, W = 2, 4, 16, 16
    KX = KY = 5

    k1, k2, k3 = jax.random.split(key, 3)
    x = jax.random.normal(k1, (B, C, H, W), dtype=jnp.float32)
    base_kernel = jax.random.normal(k2, (1, C, KX, KY), dtype=jnp.float32)

    # Static non-zero regions of the grating kernel: (R, 2, 2) = [[x0,x1],[y0,y1]]
    regions = np.array(
        [[[0, 2], [0, 5]],
         [[2, 4], [0, 5]],
         [[4, 5], [2, 4]]],
        dtype=np.int32,
    )
    R = regions.shape[0]
    # nn.Parameter(torch.ones(len(regions), channels))
    grating_spectrum = jnp.ones((R, C), dtype=jnp.float32)

    out = grating_modulation_learner_forward(x, base_kernel, regions, grating_spectrum)
    out = jax.block_until_ready(out)
    assert out.shape == (B, 1, H, W)

    # Reference check with XLA conv (same semantics: conv2d, 'same' zero padding).
    filled = fill_kernel(base_kernel, regions, grating_spectrum)
    ref = lax.conv_general_dilated(
        x, filled, window_strides=(1, 1), padding="SAME",
        dimension_numbers=("NCHW", "OIHW", "NCHW"),
        precision=jax.lax.Precision.HIGHEST,
    )
    np.testing.assert_allclose(np.asarray(out), np.asarray(ref), rtol=1e-4, atol=1e-4)

    # Even-kernel check (review correctness concern): ph=(K-1)//2 matches SAME for even K.
    base_even = jax.random.normal(k3, (1, C, 4, 4), dtype=jnp.float32)
    regions_even = np.array([[[0, 4], [0, 4]]], dtype=np.int32)
    gs_even = jnp.ones((1, C), dtype=jnp.float32)
    out_even = grating_modulation_learner_forward(x, base_even, regions_even, gs_even)
    out_even = jax.block_until_ready(out_even)
    filled_even = fill_kernel(base_even, regions_even, gs_even)
    ref_even = lax.conv_general_dilated(
        x, filled_even, window_strides=(1, 1), padding="SAME",
        dimension_numbers=("NCHW", "OIHW", "NCHW"),
        precision=jax.lax.Precision.HIGHEST,
    )
    np.testing.assert_allclose(np.asarray(out_even), np.asarray(ref_even),
                               rtol=1e-4, atol=1e-4)

    print("KERNEL_OK")
</pallas_src>

<mosaic_0001>
module attributes {stable_mosaic.version = 11 : i64} {
  func.func @body(%arg0: i32, %arg1: memref<1x4x24x128xf32, #tpu.memory_space<vmem>>, %arg2: memref<100xf32, #tpu.memory_space<smem>>, %arg3: memref<1x16x128xf32, #tpu.memory_space<vmem>>) attributes {dimension_semantics = [#tpu.dimension_semantics<parallel>], iteration_bounds = array<i64: 2>, scalar_prefetch = 0 : i64, scratch_operands = 0 : i64, tpu.core_type = #tpu.core_type<tc>, window_params = [{transform_indices = @transform_0, window_bounds = array<i64: 1, 4, 24, 128>}, {transform_indices = @transform_1, window_bounds = array<i64: 100>}, {transform_indices = @transform_2, window_bounds = array<i64: 1, 16, 128>}]} {
    %c0_i32 = arith.constant 0 : i32
    %c16_i32 = arith.constant 16 : i32
    %0 = arith.muli %c0_i32, %c16_i32 : i32
    %1 = tpu.assume_multiple %0, 16 : i32
    %cst = arith.constant 0.000000e+00 : f32
    %2 = vector.broadcast %cst : f32 to vector<16x128xf32>
    %cst_0 = arith.constant 0.000000e+00 : f32
    %3 = vector.broadcast %cst_0 : f32 to vector<16x128xf32>
    %cst_1 = arith.constant 0.000000e+00 : f32
    %4 = vector.broadcast %cst_1 : f32 to vector<16x128xf32>
    %cst_2 = arith.constant 0.000000e+00 : f32
    %5 = vector.broadcast %cst_2 : f32 to vector<16x128xf32>
    %cst_3 = arith.constant 0.000000e+00 : f32
    %6 = vector.broadcast %cst_3 : f32 to vector<16x128xf32>
    %c0 = arith.constant 0 : index
    %c0_4 = arith.constant 0 : index
    %7 = arith.index_cast %1 : i32 to index
    %c0_5 = arith.constant 0 : index
    %8 = vector.load %arg1[%c0, %c0_4, %7, %c0_5] : memref<1x4x24x128xf32, #tpu.memory_space<vmem>>, vector<1x1x24x128xf32>
    %9 = vector.shape_cast %8 : vector<1x1x24x128xf32> to vector<24x128xf32>
    %10 = vector.extract_strided_slice %9 {offsets = [0, 0], sizes = [16, 128], strides = [1, 1]} : vector<24x128xf32> to vector<16x128xf32>
    %c0_6 = arith.constant 0 : index
    %11 = memref.load %arg2[%c0_6] : memref<100xf32, #tpu.memory_space<smem>>
    %12 = vector.broadcast %11 : f32 to vector<16x128xf32>
    %13 = arith.mulf %10, %12 : vector<16x128xf32>
    %14 = arith.addf %2, %13 : vector<16x128xf32>
    %c1 = arith.constant 1 : index
    %15 = memref.load %arg2[%c1] : memref<100xf32, #tpu.memory_space<smem>>
    %16 = vector.broadcast %15 : f32 to vector<16x128xf32>
    %17 = arith.mulf %10, %16 : vector<16x128xf32>
    %18 = arith.addf %3, %17 : vector<16x128xf32>
    %c2 = arith.constant 2 : index
    %19 = memref.load %arg2[%c2] : memref<100xf32, #tpu.memory_space<smem>>
    %20 = vector.broadcast %19 : f32 to vector<16x128xf32>
    %21 = arith.mulf %10, %20 : vector<16x128xf32>
    %22 = arith.addf %4, %21 : vector<16x128xf32>
    %c3 = arith.constant 3 : index
    %23 = memref.load %arg2[%c3] : memref<100xf32, #tpu.memory_space<smem>>
    %24 = vector.broadcast %23 : f32 to vector<16x128xf32>
    %25 = arith.mulf %10, %24 : vector<16x128xf32>
    %26 = arith.addf %5, %25 : vector<16x128xf32>
    %c4 = arith.constant 4 : index
    %27 = memref.load %arg2[%c4] : memref<100xf32, #tpu.memory_space<smem>>
    %28 = vector.broadcast %27 : f32 to vector<16x128xf32>
    %29 = arith.mulf %10, %28 : vector<16x128xf32>
    %30 = arith.addf %6, %29 : vector<16x128xf32>
    %c23_i32 = arith.constant 23 : i32
    %31 = tpu.dynamic_rotate %9 by %c23_i32 dim 0 : vector<24x128xf32>, i32 -> vector<24x128xf32>
    %32 = vector.extract_strided_slice %31 {offsets = [0, 0], sizes = [16, 128], strides = [1, 1]} : vector<24x128xf32> to vector<16x128xf32>
    %c5 = arith.constant 5 : index
    %33 = memref.load %arg2[%c5] : memref<100xf32, #tpu.memory_space<smem>>
    %34 = vector.broadcast %33 : f32 to vector<16x128xf32>
    %35 = arith.mulf %32, %34 : vector<16x128xf32>
    %36 = arith.addf %14, %35 : vector<16x128xf32>
    %c6 = arith.constant 6 : index
    %37 = memref.load %arg2[%c6] : memref<100xf32, #tpu.memory_space<smem>>
    %38 = vector.broadcast %37 : f32 to vector<16x128xf32>
    %39 = arith.mulf %32, %38 : vector<16x128xf32>
    %40 = arith.addf %18, %39 : vector<16x128xf32>
    %c7 = arith.constant 7 : index
    %41 = memref.load %arg2[%c7] : memref<100xf32, #tpu.memory_space<smem>>
    %42 = vector.broadcast %41 : f32 to vector<16x128xf32>
    %43 = arith.mulf %32, %42 : vector<16x128xf32>
    %44 = arith.addf %22, %43 : vector<16x128xf32>
    %c8 = arith.constant 8 : index
    %45 = memref.load %arg2[%c8] : memref<100xf32, #tpu.memory_space<smem>>
    %46 = vector.broadcast %45 : f32 to vector<16x128xf32>
    %47 = arith.mulf %32, %46 : vector<16x128xf32>
    %48 = arith.addf %26, %47 : vector<16x128xf32>
    %c9 = arith.constant 9 : index
    %49 = memref.load %arg2[%c9] : memref<100xf32, #tpu.memory_space<smem>>
    %50 = vector.broadcast %49 : f32 to vector<16x128xf32>
    %51 = arith.mulf %32, %50 : vector<16x128xf32>
    %52 = arith.addf %30, %51 : vector<16x128xf32>
    %c22_i32 = arith.constant 22 : i32
    %53 = tpu.dynamic_rotate %9 by %c22_i32 dim 0 : vector<24x128xf32>, i32 -> vector<24x128xf32>
    %54 = vector.extract_strided_slice %53 {offsets = [0, 0], sizes = [16, 128], strides = [1, 1]} : vector<24x128xf32> to vector<16x128xf32>
    %c10 = arith.constant 10 : index
    %55 = memref.load %arg2[%c10] : memref<100xf32, #tpu.memory_space<smem>>
    %56 = vector.broadcast %55 : f32 to vector<16x128xf32>
    %57 = arith.mulf %54, %56 : vector<16x128xf32>
    %58 = arith.addf %36, %57 : vector<16x128xf32>
    %c11 = arith.constant 11 : index
    %59 = memref.load %arg2[%c11] : memref<100xf32, #tpu.memory_space<smem>>
    %60 = vector.broadcast %59 : f32 to vector<16x128xf32>
    %61 = arith.mulf %54, %60 : vector<16x128xf32>
    %62 = arith.addf %40, %61 : vector<16x128xf32>
    %c12 = arith.constant 12 : index
    %63 = memref.load %arg2[%c12] : memref<100xf32, #tpu.memory_space<smem>>
    %64 = vector.broadcast %63 : f32 to vector<16x128xf32>
    %65 = arith.mulf %54, %64 : vector<16x128xf32>
    %66 = arith.addf %44, %65 : vector<16x128xf32>
    %c13 = arith.constant 13 : index
    %67 = memref.load %arg2[%c13] : memref<100xf32, #tpu.memory_space<smem>>
    %68 = vector.broadcast %67 : f32 to vector<16x128xf32>
    %69 = arith.mulf %54, %68 : vector<16x128xf32>
    %70 = arith.addf %48, %69 : vector<16x128xf32>
    %c14 = arith.constant 14 : index
    %71 = memref.load %arg2[%c14] : memref<100xf32, #tpu.memory_space<smem>>
    %72 = vector.broadcast %71 : f32 to vector<16x128xf32>
    %73 = arith.mulf %54, %72 : vector<16x128xf32>
    %74 = arith.addf %52, %73 : vector<16x128xf32>
    %c21_i32 = arith.constant 21 : i32
    %75 = tpu.dynamic_rotate %9 by %c21_i32 dim 0 : vector<24x128xf32>, i32 -> vector<24x128xf32>
    %76 = vector.extract_strided_slice %75 {offsets = [0, 0], sizes = [16, 128], strides = [1, 1]} : vector<24x128xf32> to vector<16x128xf32>
    %c15 = arith.constant 15 : index
    %77 = memref.load %arg2[%c15] : memref<100xf32, #tpu.memory_space<smem>>
    %78 = vector.broadcast %77 : f32 to vector<16x128xf32>
    %79 = arith.mulf %76, %78 : vector<16x128xf32>
    %80 = arith.addf %58, %79 : vector<16x128xf32>
    %c16 = arith.constant 16 : index
    %81 = memref.load %arg2[%c16] : memref<100xf32, #tpu.memory_space<smem>>
    %82 = vector.broadcast %81 : f32 to vector<16x128xf32>
    %83 = arith.mulf %76, %82 : vector<16x128xf32>
    %84 = arith.addf %62, %83 : vector<16x128xf32>
    %c17 = arith.constant 17 : index
    %85 = memref.load %arg2[%c17] : memref<100xf32, #tpu.memory_space<smem>>
    %86 = vector.broadcast %85 : f32 to vector<16x128xf32>
    %87 = arith.mulf %76, %86 : vector<16x128xf32>
    %88 = arith.addf %66, %87 : vector<16x128xf32>
    %c18 = arith.constant 18 : index
    %89 = memref.load %arg2[%c18] : memref<100xf32, #tpu.memory_space<smem>>
    %90 = vector.broadcast %89 : f32 to vector<16x128xf32>
    %91 = arith.mulf %76, %90 : vector<16x128xf32>
    %92 = arith.addf %70, %91 : vector<16x128xf32>
    %c19 = arith.constant 19 : index
    %93 = memref.load %arg2[%c19] : memref<100xf32, #tpu.memory_space<smem>>
    %94 = vector.broadcast %93 : f32 to vector<16x128xf32>
    %95 = arith.mulf %76, %94 : vector<16x128xf32>
    %96 = arith.addf %74, %95 : vector<16x128xf32>
    %c20_i32 = arith.constant 20 : i32
    %97 = tpu.dynamic_rotate %9 by %c20_i32 dim 0 : vector<24x128xf32>, i32 -> vector<24x128xf32>
    %98 = vector.extract_strided_slice %97 {offsets = [0, 0], sizes = [16, 128], strides = [1, 1]} : vector<24x128xf32> to vector<16x128xf32>
    %c20 = arith.constant 20 : index
    %99 = memref.load %arg2[%c20] : memref<100xf32, #tpu.memory_space<smem>>
    %100 = vector.broadcast %99 : f32 to vector<16x128xf32>
    %101 = arith.mulf %98, %100 : vector<16x128xf32>
    %102 = arith.addf %80, %101 : vector<16x128xf32>
    %c21 = arith.constant 21 : index
    %103 = memref.load %arg2[%c21] : memref<100xf32, #tpu.memory_space<smem>>
    %104 = vector.broadcast %103 : f32 to vector<16x128xf32>
    %105 = arith.mulf %98, %104 : vector<16x128xf32>
    %106 = arith.addf %84, %105 : vector<16x128xf32>
    %c22 = arith.constant 22 : index
    %107 = memref.load %arg2[%c22] : memref<100xf32, #tpu.memory_space<smem>>
    %108 = vector.broadcast %107 : f32 to vector<16x128xf32>
    %109 = arith.mulf %98, %108 : vector<16x128xf32>
    %110 = arith.addf %88, %109 : vector<16x128xf32>
    %c23 = arith.constant 23 : index
    %111 = memref.load %arg2[%c23] : memref<100xf32, #tpu.memory_space<smem>>
    %112 = vector.broadcast %111 : f32 to vector<16x128xf32>
    %113 = arith.mulf %98, %112 : vector<16x128xf32>
    %114 = arith.addf %92, %113 : vector<16x128xf32>
    %c24 = arith.constant 24 : index
    %115 = memref.load %arg2[%c24] : memref<100xf32, #tpu.memory_space<smem>>
    %116 = vector.broadcast %115 : f32 to vector<16x128xf32>
    %117 = arith.mulf %98, %116 : vector<16x128xf32>
    %118 = arith.addf %96, %117 : vector<16x128xf32>
    %c0_7 = arith.constant 0 : index
    %c1_8 = arith.constant 1 : index
    %119 = arith.index_cast %1 : i32 to index
    %c0_9 = arith.constant 0 : index
    %120 = vector.load %arg1[%c0_7, %c1_8, %119, %c0_9] : memref<1x4x24x128xf32, #tpu.memory_space<vmem>>, vector<1x1x24x128xf32>
    %121 = vector.shape_cast %120 : vector<1x1x24x128xf32> to vector<24x128xf32>
    %122 = vector.extract_strided_slice %121 {offsets = [0, 0], sizes = [16, 128], strides = [1, 1]} : vector<24x128xf32> to vector<16x128xf32>
    %c25 = arith.constant 25 : index
    %123 = memref.load %arg2[%c25] : memref<100xf32, #tpu.memory_space<smem>>
    %124 = vector.broadcast %123 : f32 to vector<16x128xf32>
    %125 = arith.mulf %122, %124 : vector<16x128xf32>
    %126 = arith.addf %102, %125 : vector<16x128xf32>
    %c26 = arith.constant 26 : index
    %127 = memref.load %arg2[%c26] : memref<100xf32, #tpu.memory_space<smem>>
    %128 = vector.broadcast %127 : f32 to vector<16x128xf32>
    %129 = arith.mulf %122, %128 : vector<16x128xf32>
    %130 = arith.addf %106, %129 : vector<16x128xf32>
    %c27 = arith.constant 27 : index
    %131 = memref.load %arg2[%c27] : memref<100xf32, #tpu.memory_space<smem>>
    %132 = vector.broadcast %131 : f32 to vector<16x128xf32>
    %133 = arith.mulf %122, %132 : vector<16x128xf32>
    %134 = arith.addf %110, %133 : vector<16x128xf32>
    %c28 = arith.constant 28 : index
    %135 = memref.load %arg2[%c28] : memref<100xf32, #tpu.memory_space<smem>>
    %136 = vector.broadcast %135 : f32 to vector<16x128xf32>
    %137 = arith.mulf %122, %136 : vector<16x128xf32>
    %138 = arith.addf %114, %137 : vector<16x128xf32>
    %c29 = arith.constant 29 : index
    %139 = memref.load %arg2[%c29] : memref<100xf32, #tpu.memory_space<smem>>
    %140 = vector.broadcast %139 : f32 to vector<16x128xf32>
    %141 = arith.mulf %122, %140 : vector<16x128xf32>
    %142 = arith.addf %118, %141 : vector<16x128xf32>
    %c23_i32_10 = arith.constant 23 : i32
    %143 = tpu.dynamic_rotate %121 by %c23_i32_10 dim 0 : vector<24x128xf32>, i32 -> vector<24x128xf32>
    %144 = vector.extract_strided_slice %143 {offsets = [0, 0], sizes = [16, 128], strides = [1, 1]} : vector<24x128xf32> to vector<16x128xf32>
    %c30 = arith.constant 30 : index
    %145 = memref.load %arg2[%c30] : memref<100xf32, #tpu.memory_space<smem>>
    %146 = vector.broadcast %145 : f32 to vector<16x128xf32>
    %147 = arith.mulf %144, %146 : vector<16x128xf32>
    %148 = arith.addf %126, %147 : vector<16x128xf32>
    %c31 = arith.constant 31 : index
    %149 = memref.load %arg2[%c31] : memref<100xf32, #tpu.memory_space<smem>>
    %150 = vector.broadcast %149 : f32 to vector<16x128xf32>
    %151 = arith.mulf %144, %150 : vector<16x128xf32>
    %152 = arith.addf %130, %151 : vector<16x128xf32>
    %c32 = arith.constant 32 : index
    %153 = memref.load %arg2[%c32] : memref<100xf32, #tpu.memory_space<smem>>
    %154 = vector.broadcast %153 : f32 to vector<16x128xf32>
    %155 = arith.mulf %144, %154 : vector<16x128xf32>
    %156 = arith.addf %134, %155 : vector<16x128xf32>
    %c33 = arith.constant 33 : index
    %157 = memref.load %arg2[%c33] : memref<100xf32, #tpu.memory_space<smem>>
    %158 = vector.broadcast %157 : f32 to vector<16x128xf32>
    %159 = arith.mulf %144, %158 : vector<16x128xf32>
    %160 = arith.addf %138, %159 : vector<16x128xf32>
    %c34 = arith.constant 34 : index
    %161 = memref.load %arg2[%c34] : memref<100xf32, #tpu.memory_space<smem>>
    %162 = vector.broadcast %161 : f32 to vector<16x128xf32>
    %163 = arith.mulf %144, %162 : vector<16x128xf32>
    %164 = arith.addf %142, %163 : vector<16x128xf32>
    %c22_i32_11 = arith.constant 22 : i32
    %165 = tpu.dynamic_rotate %121 by %c22_i32_11 dim 0 : vector<24x128xf32>, i32 -> vector<24x128xf32>
    %166 = vector.extract_strided_slice %165 {offsets = [0, 0], sizes = [16, 128], strides = [1, 1]} : vector<24x128xf32> to vector<16x128xf32>
    %c35 = arith.constant 35 : index
    %167 = memref.load %arg2[%c35] : memref<100xf32, #tpu.memory_space<smem>>
    %168 = vector.broadcast %167 : f32 to vector<16x128xf32>
    %169 = arith.mulf %166, %168 : vector<16x128xf32>
    %170 = arith.addf %148, %169 : vector<16x128xf32>
    %c36 = arith.constant 36 : index
    %171 = memref.load %arg2[%c36] : memref<100xf32, #tpu.memory_space<smem>>
    %172 = vector.broadcast %171 : f32 to vector<16x128xf32>
    %173 = arith.mulf %166, %172 : vector<16x128xf32>
    %174 = arith.addf %152, %173 : vector<16x128xf32>
    %c37 = arith.constant 37 : index
    %175 = memref.load %arg2[%c37] : memref<100xf32, #tpu.memory_space<smem>>
    %176 = vector.broadcast %175 : f32 to vector<16x128xf32>
    %177 = arith.mulf %166, %176 : vector<16x128xf32>
    %178 = arith.addf %156, %177 : vector<16x128xf32>
    %c38 = arith.constant 38 : index
    %179 = memref.load %arg2[%c38] : memref<100xf32, #tpu.memory_space<smem>>
    %180 = vector.broadcast %179 : f32 to vector<16x128xf32>
    %181 = arith.mulf %166, %180 : vector<16x128xf32>
    %182 = arith.addf %160, %181 : vector<16x128xf32>
    %c39 = arith.constant 39 : index
    %183 = memref.load %arg2[%c39] : memref<100xf32, #tpu.memory_space<smem>>
    %184 = vector.broadcast %183 : f32 to vector<16x128xf32>
    %185 = arith.mulf %166, %184 : vector<16x128xf32>
    %186 = arith.addf %164, %185 : vector<16x128xf32>
    %c21_i32_12 = arith.constant 21 : i32
    %187 = tpu.dynamic_rotate %121 by %c21_i32_12 dim 0 : vector<24x128xf32>, i32 -> vector<24x128xf32>
    %188 = vector.extract_strided_slice %187 {offsets = [0, 0], sizes = [16, 128], strides = [1, 1]} : vector<24x128xf32> to vector<16x128xf32>
    %c40 = arith.constant 40 : index
    %189 = memref.load %arg2[%c40] : memref<100xf32, #tpu.memory_space<smem>>
    %190 = vector.broadcast %189 : f32 to vector<16x128xf32>
    %191 = arith.mulf %188, %190 : vector<16x128xf32>
    %192 = arith.addf %170, %191 : vector<16x128xf32>
    %c41 = arith.constant 41 : index
    %193 = memref.load %arg2[%c41] : memref<100xf32, #tpu.memory_space<smem>>
    %194 = vector.broadcast %193 : f32 to vector<16x128xf32>
    %195 = arith.mulf %188, %194 : vector<16x128xf32>
    %196 = arith.addf %174, %195 : vector<16x128xf32>
    %c42 = arith.constant 42 : index
    %197 = memref.load %arg2[%c42] : memref<100xf32, #tpu.memory_space<smem>>
    %198 = vector.broadcast %197 : f32 to vector<16x128xf32>
    %199 = arith.mulf %188, %198 : vector<16x128xf32>
    %200 = arith.addf %178, %199 : vector<16x128xf32>
    %c43 = arith.constant 43 : index
    %201 = memref.load %arg2[%c43] : memref<100xf32, #tpu.memory_space<smem>>
    %202 = vector.broadcast %201 : f32 to vector<16x128xf32>
    %203 = arith.mulf %188, %202 : vector<16x128xf32>
    %204 = arith.addf %182, %203 : vector<16x128xf32>
    %c44 = arith.constant 44 : index
    %205 = memref.load %arg2[%c44] : memref<100xf32, #tpu.memory_space<smem>>
    %206 = vector.broadcast %205 : f32 to vector<16x128xf32>
    %207 = arith.mulf %188, %206 : vector<16x128xf32>
    %208 = arith.addf %186, %207 : vector<16x128xf32>
    %c20_i32_13 = arith.constant 20 : i32
    %209 = tpu.dynamic_rotate %121 by %c20_i32_13 dim 0 : vector<24x128xf32>, i32 -> vector<24x128xf32>
    %210 = vector.extract_strided_slice %209 {offsets = [0, 0], sizes = [16, 128], strides = [1, 1]} : vector<24x128xf32> to vector<16x128xf32>
    %c45 = arith.constant 45 : index
    %211 = memref.load %arg2[%c45] : memref<100xf32, #tpu.memory_space<smem>>
    %212 = vector.broadcast %211 : f32 to vector<16x128xf32>
    %213 = arith.mulf %210, %212 : vector<16x128xf32>
    %214 = arith.addf %192, %213 : vector<16x128xf32>
    %c46 = arith.constant 46 : index
    %215 = memref.load %arg2[%c46] : memref<100xf32, #tpu.memory_space<smem>>
    %216 = vector.broadcast %215 : f32 to vector<16x128xf32>
    %217 = arith.mulf %210, %216 : vector<16x128xf32>
    %218 = arith.addf %196, %217 : vector<16x128xf32>
    %c47 = arith.constant 47 : index
    %219 = memref.load %arg2[%c47] : memref<100xf32, #tpu.memory_space<smem>>
    %220 = vector.broadcast %219 : f32 to vector<16x128xf32>
    %221 = arith.mulf %210, %220 : vector<16x128xf32>
    %222 = arith.addf %200, %221 : vector<16x128xf32>
    %c48 = arith.constant 48 : index
    %223 = memref.load %arg2[%c48] : memref<100xf32, #tpu.memory_space<smem>>
    %224 = vector.broadcast %223 : f32 to vector<16x128xf32>
    %225 = arith.mulf %210, %224 : vector<16x128xf32>
    %226 = arith.addf %204, %225 : vector<16x128xf32>
    %c49 = arith.constant 49 : index
    %227 = memref.load %arg2[%c49] : memref<100xf32, #tpu.memory_space<smem>>
    %228 = vector.broadcast %227 : f32 to vector<16x128xf32>
    %229 = arith.mulf %210, %228 : vector<16x128xf32>
    %230 = arith.addf %208, %229 : vector<16x128xf32>
    %c0_14 = arith.constant 0 : index
    %c2_15 = arith.constant 2 : index
    %231 = arith.index_cast %1 : i32 to index
    %c0_16 = arith.constant 0 : index
    %232 = vector.load %arg1[%c0_14, %c2_15, %231, %c0_16] : memref<1x4x24x128xf32, #tpu.memory_space<vmem>>, vector<1x1x24x128xf32>
    %233 = vector.shape_cast %232 : vector<1x1x24x128xf32> to vector<24x128xf32>
    %234 = vector.extract_strided_slice %233 {offsets = [0, 0], sizes = [16, 128], strides = [1, 1]} : vector<24x128xf32> to vector<16x128xf32>
    %c50 = arith.constant 50 : index
    %235 = memref.load %arg2[%c50] : memref<100xf32, #tpu.memory_space<smem>>
    %236 = vector.broadcast %235 : f32 to vector<16x128xf32>
    %237 = arith.mulf %234, %236 : vector<16x128xf32>
    %238 = arith.addf %214, %237 : vector<16x128xf32>
    %c51 = arith.constant 51 : index
    %239 = memref.load %arg2[%c51] : memref<100xf32, #tpu.memory_space<smem>>
    %240 = vector.broadcast %239 : f32 to vector<16x128xf32>
    %241 = arith.mulf %234, %240 : vector<16x128xf32>
    %242 = arith.addf %218, %241 : vector<16x128xf32>
    %c52 = arith.constant 52 : index
    %243 = memref.load %arg2[%c52] : memref<100xf32, #tpu.memory_space<smem>>
    %244 = vector.broadcast %243 : f32 to vector<16x128xf32>
    %245 = arith.mulf %234, %244 : vector<16x128xf32>
    %246 = arith.addf %222, %245 : vector<16x128xf32>
    %c53 = arith.constant 53 : index
    %247 = memref.load %arg2[%c53] : memref<100xf32, #tpu.memory_space<smem>>
    %248 = vector.broadcast %247 : f32 to vector<16x128xf32>
    %249 = arith.mulf %234, %248 : vector<16x128xf32>
    %250 = arith.addf %226, %249 : vector<16x128xf32>
    %c54 = arith.constant 54 : index
    %251 = memref.load %arg2[%c54] : memref<100xf32, #tpu.memory_space<smem>>
    %252 = vector.broadcast %251 : f32 to vector<16x128xf32>
    %253 = arith.mulf %234, %252 : vector<16x128xf32>
    %254 = arith.addf %230, %253 : vector<16x128xf32>
    %c23_i32_17 = arith.constant 23 : i32
    %255 = tpu.dynamic_rotate %233 by %c23_i32_17 dim 0 : vector<24x128xf32>, i32 -> vector<24x128xf32>
    %256 = vector.extract_strided_slice %255 {offsets = [0, 0], sizes = [16, 128], strides = [1, 1]} : vector<24x128xf32> to vector<16x128xf32>
    %c55 = arith.constant 55 : index
    %257 = memref.load %arg2[%c55] : memref<100xf32, #tpu.memory_space<smem>>
    %258 = vector.broadcast %257 : f32 to vector<16x128xf32>
    %259 = arith.mulf %256, %258 : vector<16x128xf32>
    %260 = arith.addf %238, %259 : vector<16x128xf32>
    %c56 = arith.constant 56 : index
    %261 = memref.load %arg2[%c56] : memref<100xf32, #tpu.memory_space<smem>>
    %262 = vector.broadcast %261 : f32 to vector<16x128xf32>
    %263 = arith.mulf %256, %262 : vector<16x128xf32>
    %264 = arith.addf %242, %263 : vector<16x128xf32>
    %c57 = arith.constant 57 : index
    %265 = memref.load %arg2[%c57] : memref<100xf32, #tpu.memory_space<smem>>
    %266 = vector.broadcast %265 : f32 to vector<16x128xf32>
    %267 = arith.mulf %256, %266 : vector<16x128xf32>
    %268 = arith.addf %246, %267 : vector<16x128xf32>
    %c58 = arith.constant 58 : index
    %269 = memref.load %arg2[%c58] : memref<100xf32, #tpu.memory_space<smem>>
    %270 = vector.broadcast %269 : f32 to vector<16x128xf32>
    %271 = arith.mulf %256, %270 : vector<16x128xf32>
    %272 = arith.addf %250, %271 : vector<16x128xf32>
    %c59 = arith.constant 59 : index
    %273 = memref.load %arg2[%c59] : memref<100xf32, #tpu.memory_space<smem>>
    %274 = vector.broadcast %273 : f32 to vector<16x128xf32>
    %275 = arith.mulf %256, %274 : vector<16x128xf32>
    %276 = arith.addf %254, %275 : vector<16x128xf32>
    %c22_i32_18 = arith.constant 22 : i32
    %277 = tpu.dynamic_rotate %233 by %c22_i32_18 dim 0 : vector<24x128xf32>, i32 -> vector<24x128xf32>
    %278 = vector.extract_strided_slice %277 {offsets = [0, 0], sizes = [16, 128], strides = [1, 1]} : vector<24x128xf32> to vector<16x128xf32>
    %c60 = arith.constant 60 : index
    %279 = memref.load %arg2[%c60] : memref<100xf32, #tpu.memory_space<smem>>
    %280 = vector.broadcast %279 : f32 to vector<16x128xf32>
    %281 = arith.mulf %278, %280 : vector<16x128xf32>
    %282 = arith.addf %260, %281 : vector<16x128xf32>
    %c61 = arith.constant 61 : index
    %283 = memref.load %arg2[%c61] : memref<100xf32, #tpu.memory_space<smem>>
    %284 = vector.broadcast %283 : f32 to vector<16x128xf32>
    %285 = arith.mulf %278, %284 : vector<16x128xf32>
    %286 = arith.addf %264, %285 : vector<16x128xf32>
    %c62 = arith.constant 62 : index
    %287 = memref.load %arg2[%c62] : memref<100xf32, #tpu.memory_space<smem>>
    %288 = vector.broadcast %287 : f32 to vector<16x128xf32>
    %289 = arith.mulf %278, %288 : vector<16x128xf32>
    %290 = arith.addf %268, %289 : vector<16x128xf32>
    %c63 = arith.constant 63 : index
    %291 = memref.load %arg2[%c63] : memref<100xf32, #tpu.memory_space<smem>>
    %292 = vector.broadcast %291 : f32 to vector<16x128xf32>
    %293 = arith.mulf %278, %292 : vector<16x128xf32>
    %294 = arith.addf %272, %293 : vector<16x128xf32>
    %c64 = arith.constant 64 : index
    %295 = memref.load %arg2[%c64] : memref<100xf32, #tpu.memory_space<smem>>
    %296 = vector.broadcast %295 : f32 to vector<16x128xf32>
    %297 = arith.mulf %278, %296 : vector<16x128xf32>
    %298 = arith.addf %276, %297 : vector<16x128xf32>
    %c21_i32_19 = arith.constant 21 : i32
    %299 = tpu.dynamic_rotate %233 by %c21_i32_19 dim 0 : vector<24x128xf32>, i32 -> vector<24x128xf32>
    %300 = vector.extract_strided_slice %299 {offsets = [0, 0], sizes = [16, 128], strides = [1, 1]} : vector<24x128xf32> to vector<16x128xf32>
    %c65 = arith.constant 65 : index
    %301 = memref.load %arg2[%c65] : memref<100xf32, #tpu.memory_space<smem>>
    %302 = vector.broadcast %301 : f32 to vector<16x128xf32>
    %303 = arith.mulf %300, %302 : vector<16x128xf32>
    %304 = arith.addf %282, %303 : vector<16x128xf32>
    %c66 = arith.constant 66 : index
    %305 = memref.load %arg2[%c66] : memref<100xf32, #tpu.memory_space<smem>>
    %306 = vector.broadcast %305 : f32 to vector<16x128xf32>
    %307 = arith.mulf %300, %306 : vector<16x128xf32>
    %308 = arith.addf %286, %307 : vector<16x128xf32>
    %c67 = arith.constant 67 : index
    %309 = memref.load %arg2[%c67] : memref<100xf32, #tpu.memory_space<smem>>
    %310 = vector.broadcast %309 : f32 to vector<16x128xf32>
    %311 = arith.mulf %300, %310 : vector<16x128xf32>
    %312 = arith.addf %290, %311 : vector<16x128xf32>
    %c68 = arith.constant 68 : index
    %313 = memref.load %arg2[%c68] : memref<100xf32, #tpu.memory_space<smem>>
    %314 = vector.broadcast %313 : f32 to vector<16x128xf32>
    %315 = arith.mulf %300, %314 : vector<16x128xf32>
    %316 = arith.addf %294, %315 : vector<16x128xf32>
    %c69 = arith.constant 69 : index
    %317 = memref.load %arg2[%c69] : memref<100xf32, #tpu.memory_space<smem>>
    %318 = vector.broadcast %317 : f32 to vector<16x128xf32>
    %319 = arith.mulf %300, %318 : vector<16x128xf32>
    %320 = arith.addf %298, %319 : vector<16x128xf32>
    %c20_i32_20 = arith.constant 20 : i32
    %321 = tpu.dynamic_rotate %233 by %c20_i32_20 dim 0 : vector<24x128xf32>, i32 -> vector<24x128xf32>
    %322 = vector.extract_strided_slice %321 {offsets = [0, 0], sizes = [16, 128], strides = [1, 1]} : vector<24x128xf32> to vector<16x128xf32>
    %c70 = arith.constant 70 : index
    %323 = memref.load %arg2[%c70] : memref<100xf32, #tpu.memory_space<smem>>
    %324 = vector.broadcast %323 : f32 to vector<16x128xf32>
    %325 = arith.mulf %322, %324 : vector<16x128xf32>
    %326 = arith.addf %304, %325 : vector<16x128xf32>
    %c71 = arith.constant 71 : index
    %327 = memref.load %arg2[%c71] : memref<100xf32, #tpu.memory_space<smem>>
    %328 = vector.broadcast %327 : f32 to vector<16x128xf32>
    %329 = arith.mulf %322, %328 : vector<16x128xf32>
    %330 = arith.addf %308, %329 : vector<16x128xf32>
    %c72 = arith.constant 72 : index
    %331 = memref.load %arg2[%c72] : memref<100xf32, #tpu.memory_space<smem>>
    %332 = vector.broadcast %331 : f32 to vector<16x128xf32>
    %333 = arith.mulf %322, %332 : vector<16x128xf32>
    %334 = arith.addf %312, %333 : vector<16x128xf32>
    %c73 = arith.constant 73 : index
    %335 = memref.load %arg2[%c73] : memref<100xf32, #tpu.memory_space<smem>>
    %336 = vector.broadcast %335 : f32 to vector<16x128xf32>
    %337 = arith.mulf %322, %336 : vector<16x128xf32>
    %338 = arith.addf %316, %337 : vector<16x128xf32>
    %c74 = arith.constant 74 : index
    %339 = memref.load %arg2[%c74] : memref<100xf32, #tpu.memory_space<smem>>
    %340 = vector.broadcast %339 : f32 to vector<16x128xf32>
    %341 = arith.mulf %322, %340 : vector<16x128xf32>
    %342 = arith.addf %320, %341 : vector<16x128xf32>
    %c0_21 = arith.constant 0 : index
    %c3_22 = arith.constant 3 : index
    %343 = arith.index_cast %1 : i32 to index
    %c0_23 = arith.constant 0 : index
    %344 = vector.load %arg1[%c0_21, %c3_22, %343, %c0_23] : memref<1x4x24x128xf32, #tpu.memory_space<vmem>>, vector<1x1x24x128xf32>
    %345 = vector.shape_cast %344 : vector<1x1x24x128xf32> to vector<24x128xf32>
    %346 = vector.extract_strided_slice %345 {offsets = [0, 0], sizes = [16, 128], strides = [1, 1]} : vector<24x128xf32> to vector<16x128xf32>
    %c75 = arith.constant 75 : index
    %347 = memref.load %arg2[%c75] : memref<100xf32, #tpu.memory_space<smem>>
    %348 = vector.broadcast %347 : f32 to vector<16x128xf32>
    %349 = arith.mulf %346, %348 : vector<16x128xf32>
    %350 = arith.addf %326, %349 : vector<16x128xf32>
    %c76 = arith.constant 76 : index
    %351 = memref.load %arg2[%c76] : memref<100xf32, #tpu.memory_space<smem>>
    %352 = vector.broadcast %351 : f32 to vector<16x128xf32>
    %353 = arith.mulf %346, %352 : vector<16x128xf32>
    %354 = arith.addf %330, %353 : vector<16x128xf32>
    %c77 = arith.constant 77 : index
    %355 = memref.load %arg2[%c77] : memref<100xf32, #tpu.memory_space<smem>>
    %356 = vector.broadcast %355 : f32 to vector<16x128xf32>
    %357 = arith.mulf %346, %356 : vector<16x128xf32>
    %358 = arith.addf %334, %357 : vector<16x128xf32>
    %c78 = arith.constant 78 : index
    %359 = memref.load %arg2[%c78] : memref<100xf32, #tpu.memory_space<smem>>
    %360 = vector.broadcast %359 : f32 to vector<16x128xf32>
    %361 = arith.mulf %346, %360 : vector<16x128xf32>
    %362 = arith.addf %338, %361 : vector<16x128xf32>
    %c79 = arith.constant 79 : index
    %363 = memref.load %arg2[%c79] : memref<100xf32, #tpu.memory_space<smem>>
    %364 = vector.broadcast %363 : f32 to vector<16x128xf32>
    %365 = arith.mulf %346, %364 : vector<16x128xf32>
    %366 = arith.addf %342, %365 : vector<16x128xf32>
    %c23_i32_24 = arith.constant 23 : i32
    %367 = tpu.dynamic_rotate %345 by %c23_i32_24 dim 0 : vector<24x128xf32>, i32 -> vector<24x128xf32>
    %368 = vector.extract_strided_slice %367 {offsets = [0, 0], sizes = [16, 128], strides = [1, 1]} : vector<24x128xf32> to vector<16x128xf32>
    %c80 = arith.constant 80 : index
    %369 = memref.load %arg2[%c80] : memref<100xf32, #tpu.memory_space<smem>>
    %370 = vector.broadcast %369 : f32 to vector<16x128xf32>
    %371 = arith.mulf %368, %370 : vector<16x128xf32>
    %372 = arith.addf %350, %371 : vector<16x128xf32>
    %c81 = arith.constant 81 : index
    %373 = memref.load %arg2[%c81] : memref<100xf32, #tpu.memory_space<smem>>
    %374 = vector.broadcast %373 : f32 to vector<16x128xf32>
    %375 = arith.mulf %368, %374 : vector<16x128xf32>
    %376 = arith.addf %354, %375 : vector<16x128xf32>
    %c82 = arith.constant 82 : index
    %377 = memref.load %arg2[%c82] : memref<100xf32, #tpu.memory_space<smem>>
    %378 = vector.broadcast %377 : f32 to vector<16x128xf32>
    %379 = arith.mulf %368, %378 : vector<16x128xf32>
    %380 = arith.addf %358, %379 : vector<16x128xf32>
    %c83 = arith.constant 83 : index
    %381 = memref.load %arg2[%c83] : memref<100xf32, #tpu.memory_space<smem>>
    %382 = vector.broadcast %381 : f32 to vector<16x128xf32>
    %383 = arith.mulf %368, %382 : vector<16x128xf32>
    %384 = arith.addf %362, %383 : vector<16x128xf32>
    %c84 = arith.constant 84 : index
    %385 = memref.load %arg2[%c84] : memref<100xf32, #tpu.memory_space<smem>>
    %386 = vector.broadcast %385 : f32 to vector<16x128xf32>
    %387 = arith.mulf %368, %386 : vector<16x128xf32>
    %388 = arith.addf %366, %387 : vector<16x128xf32>
    %c22_i32_25 = arith.constant 22 : i32
    %389 = tpu.dynamic_rotate %345 by %c22_i32_25 dim 0 : vector<24x128xf32>, i32 -> vector<24x128xf32>
    %390 = vector.extract_strided_slice %389 {offsets = [0, 0], sizes = [16, 128], strides = [1, 1]} : vector<24x128xf32> to vector<16x128xf32>
    %c85 = arith.constant 85 : index
    %391 = memref.load %arg2[%c85] : memref<100xf32, #tpu.memory_space<smem>>
    %392 = vector.broadcast %391 : f32 to vector<16x128xf32>
    %393 = arith.mulf %390, %392 : vector<16x128xf32>
    %394 = arith.addf %372, %393 : vector<16x128xf32>
    %c86 = arith.constant 86 : index
    %395 = memref.load %arg2[%c86] : memref<100xf32, #tpu.memory_space<smem>>
    %396 = vector.broadcast %395 : f32 to vector<16x128xf32>
    %397 = arith.mulf %390, %396 : vector<16x128xf32>
    %398 = arith.addf %376, %397 : vector<16x128xf32>
    %c87 = arith.constant 87 : index
    %399 = memref.load %arg2[%c87] : memref<100xf32, #tpu.memory_space<smem>>
    %400 = vector.broadcast %399 : f32 to vector<16x128xf32>
    %401 = arith.mulf %390, %400 : vector<16x128xf32>
    %402 = arith.addf %380, %401 : vector<16x128xf32>
    %c88 = arith.constant 88 : index
    %403 = memref.load %arg2[%c88] : memref<100xf32, #tpu.memory_space<smem>>
    %404 = vector.broadcast %403 : f32 to vector<16x128xf32>
    %405 = arith.mulf %390, %404 : vector<16x128xf32>
    %406 = arith.addf %384, %405 : vector<16x128xf32>
    %c89 = arith.constant 89 : index
    %407 = memref.load %arg2[%c89] : memref<100xf32, #tpu.memory_space<smem>>
    %408 = vector.broadcast %407 : f32 to vector<16x128xf32>
    %409 = arith.mulf %390, %408 : vector<16x128xf32>
    %410 = arith.addf %388, %409 : vector<16x128xf32>
    %c21_i32_26 = arith.constant 21 : i32
    %411 = tpu.dynamic_rotate %345 by %c21_i32_26 dim 0 : vector<24x128xf32>, i32 -> vector<24x128xf32>
    %412 = vector.extract_strided_slice %411 {offsets = [0, 0], sizes = [16, 128], strides = [1, 1]} : vector<24x128xf32> to vector<16x128xf32>
    %c90 = arith.constant 90 : index
    %413 = memref.load %arg2[%c90] : memref<100xf32, #tpu.memory_space<smem>>
    %414 = vector.broadcast %413 : f32 to vector<16x128xf32>
    %415 = arith.mulf %412, %414 : vector<16x128xf32>
    %416 = arith.addf %394, %415 : vector<16x128xf32>
    %c91 = arith.constant 91 : index
    %417 = memref.load %arg2[%c91] : memref<100xf32, #tpu.memory_space<smem>>
    %418 = vector.broadcast %417 : f32 to vector<16x128xf32>
    %419 = arith.mulf %412, %418 : vector<16x128xf32>
    %420 = arith.addf %398, %419 : vector<16x128xf32>
    %c92 = arith.constant 92 : index
    %421 = memref.load %arg2[%c92] : memref<100xf32, #tpu.memory_space<smem>>
    %422 = vector.broadcast %421 : f32 to vector<16x128xf32>
    %423 = arith.mulf %412, %422 : vector<16x128xf32>
    %424 = arith.addf %402, %423 : vector<16x128xf32>
    %c93 = arith.constant 93 : index
    %425 = memref.load %arg2[%c93] : memref<100xf32, #tpu.memory_space<smem>>
    %426 = vector.broadcast %425 : f32 to vector<16x128xf32>
    %427 = arith.mulf %412, %426 : vector<16x128xf32>
    %428 = arith.addf %406, %427 : vector<16x128xf32>
    %c94 = arith.constant 94 : index
    %429 = memref.load %arg2[%c94] : memref<100xf32, #tpu.memory_space<smem>>
    %430 = vector.broadcast %429 : f32 to vector<16x128xf32>
    %431 = arith.mulf %412, %430 : vector<16x128xf32>
    %432 = arith.addf %410, %431 : vector<16x128xf32>
    %c20_i32_27 = arith.constant 20 : i32
    %433 = tpu.dynamic_rotate %345 by %c20_i32_27 dim 0 : vector<24x128xf32>, i32 -> vector<24x128xf32>
    %434 = vector.extract_strided_slice %433 {offsets = [0, 0], sizes = [16, 128], strides = [1, 1]} : vector<24x128xf32> to vector<16x128xf32>
    %c95 = arith.constant 95 : index
    %435 = memref.load %arg2[%c95] : memref<100xf32, #tpu.memory_space<smem>>
    %436 = vector.broadcast %435 : f32 to vector<16x128xf32>
    %437 = arith.mulf %434, %436 : vector<16x128xf32>
    %438 = arith.addf %416, %437 : vector<16x128xf32>
    %c96 = arith.constant 96 : index
    %439 = memref.load %arg2[%c96] : memref<100xf32, #tpu.memory_space<smem>>
    %440 = vector.broadcast %439 : f32 to vector<16x128xf32>
    %441 = arith.mulf %434, %440 : vector<16x128xf32>
    %442 = arith.addf %420, %441 : vector<16x128xf32>
    %c97 = arith.constant 97 : index
    %443 = memref.load %arg2[%c97] : memref<100xf32, #tpu.memory_space<smem>>
    %444 = vector.broadcast %443 : f32 to vector<16x128xf32>
    %445 = arith.mulf %434, %444 : vector<16x128xf32>
    %446 = arith.addf %424, %445 : vector<16x128xf32>
    %c98 = arith.constant 98 : index
    %447 = memref.load %arg2[%c98] : memref<100xf32, #tpu.memory_space<smem>>
    %448 = vector.broadcast %447 : f32 to vector<16x128xf32>
    %449 = arith.mulf %434, %448 : vector<16x128xf32>
    %450 = arith.addf %428, %449 : vector<16x128xf32>
    %c99 = arith.constant 99 : index
    %451 = memref.load %arg2[%c99] : memref<100xf32, #tpu.memory_space<smem>>
    %452 = vector.broadcast %451 : f32 to vector<16x128xf32>
    %453 = arith.mulf %434, %452 : vector<16x128xf32>
    %454 = arith.addf %432, %453 : vector<16x128xf32>
    %cst_28 = arith.constant 0.000000e+00 : f32
    %455 = vector.broadcast %cst_28 : f32 to vector<16x128xf32>
    %c2_i32 = arith.constant 2 : i32
    %456 = tpu.dynamic_rotate %438 by %c2_i32 dim 1 : vector<16x128xf32>, i32 -> vector<16x128xf32>
    %457 = arith.addf %455, %456 : vector<16x128xf32>
    %c1_i32 = arith.constant 1 : i32
    %458 = tpu.dynamic_rotate %442 by %c1_i32 dim 1 : vector<16x128xf32>, i32 -> vector<16x128xf32>
    %459 = arith.addf %457, %458 : vector<16x128xf32>
    %460 = arith.addf %459, %446 : vector<16x128xf32>
    %c127_i32 = arith.constant 127 : i32
    %461 = tpu.dynamic_rotate %450 by %c127_i32 dim 1 : vector<16x128xf32>, i32 -> vector<16x128xf32>
    %462 = arith.addf %460, %461 : vector<16x128xf32>
    %c126_i32 = arith.constant 126 : i32
    %463 = tpu.dynamic_rotate %454 by %c126_i32 dim 1 : vector<16x128xf32>, i32 -> vector<16x128xf32>
    %464 = arith.addf %462, %463 : vector<16x128xf32>
    %c0_29 = arith.constant 0 : index
    %465 = arith.index_cast %1 : i32 to index
    %c0_30 = arith.constant 0 : index
    %466 = vector.load %arg3[%c0_29, %465, %c0_30] : memref<1x16x128xf32, #tpu.memory_space<vmem>>, vector<1x16x128xf32>
    %467 = vector.shape_cast %466 : vector<1x16x128xf32> to vector<16x128xf32>
    %468 = vector.shape_cast %464 : vector<16x128xf32> to vector<1x16x128xf32>
    tpu.vector_store %arg3[%c0_29, %465, %c0_30], %468 {strides = array<i32>} : memref<1x16x128xf32, #tpu.memory_space<vmem>>, vector<1x16x128xf32>,
    %c1_i32_31 = arith.constant 1 : i32
    return
  }
  func.func @transform_0(%arg0: i32) -> (i32, i32, i32, i32) {
    %c0_i32 = arith.constant 0 : i32
    %c0_i32_0 = arith.constant 0 : i32
    %c0_i32_1 = arith.constant 0 : i32
    %c0_i32_2 = arith.constant 0 : i32
    return %arg0, %c0_i32, %c0_i32_0, %c0_i32_1 : i32, i32, i32, i32
  }
  func.func @transform_1(%arg0: i32) -> i32 {
    %c0_i32 = arith.constant 0 : i32
    %c0_i32_0 = arith.constant 0 : i32
    return %c0_i32 : i32
  }
  func.func @transform_2(%arg0: i32) -> (i32, i32, i32) {
    %c0_i32 = arith.constant 0 : i32
    %c0_i32_0 = arith.constant 0 : i32
    %c0_i32_1 = arith.constant 0 : i32
    return %arg0, %c0_i32, %c0_i32_0 : i32, i32, i32
  }
}

</mosaic_0001>

<llo_original>
// kernel: tpu_custom_call.1
$region0: #{tpu_custom_call.1}
  #allocation0 [shape = 'u32[]', space=smem, size = 0x4, offset = 0x4, fixed_abs, tag = 'smem constant byte address 0x4 - core index']
  #allocation1 [shape = 'u32[144,128]{1,0:T(1,128)}', space=vmem, size = 0x12000, scoped, tag = 'internal scratch']
  %s0 = inlined_call_operand.hbm [shape: f32[2,4,24,128], index: 0, kind: input, shape index: {}]
  %s1 = inlined_call_operand.vmem [shape: f32[100], index: 1, kind: input, shape index: {}]
  %s2 = inlined_call_operand.hbm [shape: f32[2,16,128], index: 2, kind: output, shape index: {}]
  %s3 = sld [smem:[#allocation0]]
  $region49: #{tpu_custom_call.1} parent=0
    _
  %s5 = ssub.s32 1, %s3
  %s6 = scalar_select 0, %s5, %s3
  $region1: #{tpu_custom_call.1} parent=0
    #allocation2 [shape = 'u8[98304]{0}', space=vmem, size = 0x18000, scoped, tag = 'input window, operand 0']
    #allocation3 [shape = 's32[2]{0}', space=sflag, size = 0x8, scoped, tag = 'scoped memory for tpu_custom_call.1']
    #allocation4 [shape = 's32[2]{0}', space=sflag, size = 0x8, scoped, tag = 'scoped memory for tpu_custom_call.1']
    #allocation5 [shape = 's32[2]{0}', space=sflag, size = 0x8, scoped, tag = 'scoped memory for tpu_custom_call.1']
    #allocation6 [shape = 'u8[512]{0}', space=smem, size = 0x200, scoped, tag = 'input window, operand 1, single buffered']
    #allocation7 [shape = 'u8[16384]{0}', space=vmem, size = 0x4000, scoped, tag = 'output window, operand 0']
    %7 = vsyncpa [#allocation3], 0
    %s8 = scalar_lea.sflag [#allocation3], 1
    %9 = vsyncpa %s8, 0
    %10 = vsyncpa [#allocation5], 0
    %11 = vsyncpa [#allocation4], 0
    %s12 = scalar_lea.sflag [#allocation4], 1
    %13 = vsyncpa %s12, 0
    loop: start=0, step=1, limit=4
    $region2: #{tpu_custom_call.1} parent=1 // loop_pre_header
      _
    $region3: #{tpu_custom_call.1} parent=1 // loop_header
      %s15 = sphi 0, %s19
      %p16 = scmp.ge.s32.totalorder %s15, 4
      %s25 = sphi 0, %s27
      %s28 = sphi 0, %s25
      %s29 = sphi 0, %s28
      %s45 = sphi 0, %s29
      %s49 = sphi 0, %s49
      %s51 = sphi 0, %s49
      %s52 = sphi 0, %s51
      %s66 = sphi 0, %s52
      %s72 = sphi 0, %s74
      %s75 = sphi 0, %s72
      %s76 = sphi 0, %s75
      %s92 = sphi 0, %s76
    $region4: #{tpu_custom_call.1} parent=1 // loop_header_branch
      %18 = sbr.rel (%p16) target = $region8
    $region5: #{tpu_custom_call.1} parent=1 // loop_body
      %s20 = ssub.s32 %s15, 1
      %s21 = ssub.s32 %s15, 2
      %s22 = sadd.s32 %s15, 1
      %s23 = ssub.s32 %s15, %s22
      %p24 = scmp.eq.s32.totalorder %s23, 0
      %s26 = sadd.s32 %s25, 1
      %s27 = scalar_select %p24, %s25, %s26
      %p30 = pneg %p24
      %p31 = scmp.eq.s32.totalorder %s15, 1
      %p32 = por %p30, %p31
      %p33 = scmp.ne.s32.totalorder %s25, %s28
      %p34 = scmp.eq.s32.totalorder %s15, 0
      %p35 = por %p33, %p34
      %p36 = scmp.ne.s32.totalorder %s25, %s28
      %p37 = scmp.eq.s32.totalorder %s20, 1
      %p38 = por %p36, %p37
      %p39 = scmp.ne.s32.totalorder %s28, %s29
      %p40 = scmp.eq.s32.totalorder %s20, 0
      %p41 = por %p39, %p40
      %p42 = scmp.ne.s32.totalorder %s28, %s29
      %p43 = scmp.eq.s32.totalorder %s21, 1
      %p44 = por %p42, %p43
      %p46 = scmp.ne.s32.totalorder %s29, %s45
      %p47 = scmp.eq.s32.totalorder %s21, 0
      %p48 = por %p46, %p47
      %s50 = sadd.s32 %s49, 1
      %p53 = scmp.eq.s32.totalorder %s15, 1
      %p54 = scmp.ne.s32.totalorder %s49, %s51
      %p55 = scmp.eq.s32.totalorder %s15, 0
      %p56 = por %p54, %p55
      %p57 = scmp.ne.s32.totalorder %s49, %s51
      %p58 = scmp.eq.s32.totalorder %s20, 1
      %p59 = por %p57, %p58
      %p60 = scmp.ne.s32.totalorder %s51, %s52
      %p61 = scmp.eq.s32.totalorder %s20, 0
      %p62 = por %p60, %p61
      %p63 = scmp.ne.s32.totalorder %s51, %s52
      %p64 = scmp.eq.s32.totalorder %s21, 1
      %p65 = por %p63, %p64
      %p67 = scmp.ne.s32.totalorder %s52, %s66
      %p68 = scmp.eq.s32.totalorder %s21, 0
      %p69 = por %p67, %p68
      %s70 = ssub.s32 %s15, %s22
      %p71 = scmp.eq.s32.totalorder %s70, 0
      %s73 = sadd.s32 %s72, 1
      %s74 = scalar_select %p71, %s72, %s73
      %p77 = pneg %p71
      %p78 = scmp.eq.s32.totalorder %s15, 1
      %p79 = por %p77, %p78
      %p80 = scmp.ne.s32.totalorder %s72, %s75
      %p81 = scmp.eq.s32.totalorder %s15, 0
      %p82 = por %p80, %p81
      %p83 = scmp.ne.s32.totalorder %s72, %s75
      %p84 = scmp.eq.s32.totalorder %s20, 1
      %p85 = por %p83, %p84
      %p86 = scmp.ne.s32.totalorder %s75, %s76
      %p87 = scmp.eq.s32.totalorder %s20, 0
      %p88 = por %p86, %p87
      %p89 = scmp.ne.s32.totalorder %s75, %s76
      %p90 = scmp.eq.s32.totalorder %s21, 1
      %p91 = por %p89, %p90
      %p93 = scmp.ne.s32.totalorder %s76, %s92
      %p94 = scmp.eq.s32.totalorder %s21, 0
      %p95 = por %p93, %p94
      %p96 = scmp.le.s32.totalorder 1, %s15
      %p97 = scmp.lt.s32.totalorder %s15, 3
      %p98 = pnand %p96, %p97
      %p99 = pneg %p98
      // Predicated region
      $region9: #{tpu_custom_call.1} parent=5 // pred_check
        _
      $region10: #{tpu_custom_call.1} parent=5 // pred_check_branch
        %101 = sbr.rel (%p98) target = $region12
      $region11: #{tpu_custom_call.1} parent=5 // pred_region
        %s102 = ssub.s32 %s15, 1
        // Predicated region
        $region13: #{tpu_custom_call.1} parent=11 // pred_check
          %p103 = pneg %p62
        $region14: #{tpu_custom_call.1} parent=11 // pred_check_branch
          %105 = sbr.rel (%p103) target = $region16
        $region15: #{tpu_custom_call.1} parent=11 // pred_region
          %s107 = ssub.s32 16, 16
          %108 = vsyncadd [#allocation5], %s107
          %s110 = sshll.u32 %s1, 4
          %s111 = int_to_ptr.vmem [resolvable:$true] %s110
          %113 = dma.vmem_to_smem %s111, 16, [#allocation6], [#allocation5]
        $region16: #{tpu_custom_call.1} parent=11 // pred_fallthru
          _
      $region12: #{tpu_custom_call.1} parent=5 // pred_fallthru
        _
      %p114 = scmp.lt.s32.totalorder %s15, 2
      // Predicated region
      $region17: #{tpu_custom_call.1} parent=5 // pred_check
        %p115 = pneg %p114
      $region18: #{tpu_custom_call.1} parent=5 // pred_check_branch
        %117 = sbr.rel (%p115) target = $region20
      $region19: #{tpu_custom_call.1} parent=5 // pred_region
        // Predicated region
        $region21: #{tpu_custom_call.1} parent=19 // pred_check
          %p118 = pneg %p35
        $region22: #{tpu_custom_call.1} parent=19 // pred_check_branch
          %120 = sbr.rel (%p118) target = $region24
        $region23: #{tpu_custom_call.1} parent=19 // pred_region
          %s121 = sand.u32 %s25, 1
          %s122 = scalar_lea.sflag [#allocation3], %s121
          %s123 = sand.u32 %s25, 1
          %s124 = smul.addr %s123, 96
          %s125 = scalar_lea.vmem [#allocation2], %s124
          %s127 = ssub.s32 1536, 1536
          %128 = vsyncadd %s122, %s127
          %s129 = smul.addr %s15, 12
          %s130 = smul.addr %s129, 128
          %s131 = scalar_lea.hbm %s0, %s130
          %s132 = sshll.u32 %s125, 4
          %s133 = int_to_ptr.vmem [resolvable:$true] %s132
          %138 = dma.hbm_to_vmem [thread:$0]  %s131, 1536, %s133, %s122, 128, 128, 8
        $region24: #{tpu_custom_call.1} parent=19 // pred_fallthru
          _
      $region20: #{tpu_custom_call.1} parent=5 // pred_fallthru
        _
      %p139 = scmp.le.s32.totalorder 1, %s15
      %p140 = scmp.lt.s32.totalorder %s15, 3
      %p141 = pnand %p139, %p140
      %p142 = pneg %p141
      // Predicated region
      $region25: #{tpu_custom_call.1} parent=5 // pred_check
        _
      $region26: #{tpu_custom_call.1} parent=5 // pred_check_branch
        %144 = sbr.rel (%p141) target = $region28
      $region27: #{tpu_custom_call.1} parent=5 // pred_region
        %s145 = ssub.s32 %s15, 1
        %s146 = sand.u32 %s28, 1
        %s147 = scalar_lea.sflag [#allocation3], %s146
        %s148 = sand.u32 %s28, 1
        %s149 = smul.addr %s148, 96
        %s150 = scalar_lea.vmem [#allocation2], %s149
        // Predicated region
        $region29: #{tpu_custom_call.1} parent=27 // pred_check
          %p151 = pneg %p41
        $region30: #{tpu_custom_call.1} parent=27 // pred_check_branch
          %153 = sbr.rel (%p151) target = $region32
        $region31: #{tpu_custom_call.1} parent=27 // pred_region
          %154 = dma.done %s147, 1536
        $region32: #{tpu_custom_call.1} parent=27 // pred_fallthru
          _
        // Predicated region
        $region33: #{tpu_custom_call.1} parent=27 // pred_check
          %p155 = pneg %p62
        $region34: #{tpu_custom_call.1} parent=27 // pred_check_branch
          %157 = sbr.rel (%p155) target = $region36
        $region35: #{tpu_custom_call.1} parent=27 // pred_region
          %158 = dma.done [#allocation5], 16
        $region36: #{tpu_custom_call.1} parent=27 // pred_fallthru
          _
        %159 = sfence
        %s160 = sand.u32 %s28, 1
        %s161 = scalar_lea.sflag [#allocation3], %s160
        %s162 = sand.u32 %s28, 1
        %s163 = smul.addr %s162, 96
        %s164 = scalar_lea.vmem [#allocation2], %s163
        %p165 = pneg %p41
        %p166 = pneg %p38
        %p167 = pneg %p62
        %p168 = pneg %p59
        %p169 = pneg %p88
        %p170 = pneg %p85
        %s171 = sand.u32 %s75, 1
        %s172 = scalar_lea.sflag [#allocation4], %s171
        %s173 = sand.u32 %s75, 1
        %s174 = smul.addr %s173, 16
        %s175 = scalar_lea.vmem [#allocation7], %s174
        %v176 = vld [vmem:[%s150] sm:$0xff]
        %v177 = vld [vmem:[%s150 + $0x8] sm:$0xff]
        %v178 = vld [vmem:[%s150 + $0x10] sm:$0xff]
        %s179 = sld [smem:[#allocation6]]
        %v180 = vstv %s179
        %v181 = vmul.f32 %v176, %v180
        %v182 = vmul.f32 %v177, %v180
        %v183 = vadd.f32 %v181, 0.0
        %v184 = vadd.f32 %v182, 0.0
        %s185 = sld [smem:[#allocation6 + $0x1]]
        %v186 = vstv %s185
        %v187 = vmul.f32 %v176, %v186
        %v188 = vmul.f32 %v177, %v186
        %v189 = vadd.f32 %v187, 0.0
        %v190 = vadd.f32 %v188, 0.0
        %s191 = sld [smem:[#allocation6 + $0x2]]
        %v192 = vstv %s191
        %v193 = vmul.f32 %v176, %v192
        %v194 = vmul.f32 %v177, %v192
        %v195 = vadd.f32 %v193, 0.0
        %v196 = vadd.f32 %v194, 0.0
        %s197 = sld [smem:[#allocation6 + $0x3]]
        %v198 = vstv %s197
        %v199 = vmul.f32 %v176, %v198
        %v200 = vmul.f32 %v177, %v198
        %v201 = vadd.f32 %v199, 0.0
        %v202 = vadd.f32 %v200, 0.0
        %s203 = sld [smem:[#allocation6 + $0x4]]
        %v204 = vstv %s203
        %v205 = vmul.f32 %v176, %v204
        %v206 = vmul.f32 %v177, %v204
        %v207 = vadd.f32 %v205, 0.0
        %v208 = vadd.f32 %v206, 0.0
        %v209 = vrot.slane %v176, 1
        %v210 = vrot.slane %v177, 1
        %v211 = vrot.slane %v178, 1
        %v212 = vlaneseq
        %v213 = vshrl.u32 %v212, 7
        %vm214 = vcmp.lt.s32.totalorder %v213, 7
        %v215 = vsel %vm214, %v210, %v211
        %v216 = vsel %vm214, %v209, %v210
        %s217 = sld [smem:[#allocation6 + $0x5]]
        %v218 = vstv %s217
        %v219 = vmul.f32 %v216, %v218
        %v220 = vmul.f32 %v215, %v218
        %v221 = vadd.f32 %v183, %v219
        %v222 = vadd.f32 %v184, %v220
        %s223 = sld [smem:[#allocation6 + $0x6]]
        %v224 = vstv %s223
        %v225 = vmul.f32 %v216, %v224
        %v226 = vmul.f32 %v215, %v224
        %v227 = vadd.f32 %v189, %v225
        %v228 = vadd.f32 %v190, %v226
        %s229 = sld [smem:[#allocation6 + $0x7]]
        %v230 = vstv %s229
        %v231 = vmul.f32 %v216, %v230
        %v232 = vmul.f32 %v215, %v230
        %v233 = vadd.f32 %v195, %v231
        %v234 = vadd.f32 %v196, %v232
        %s235 = sld [smem:[#allocation6 + $0x8]]
        %v236 = vstv %s235
        %v237 = vmul.f32 %v216, %v236
        %v238 = vmul.f32 %v215, %v236
        %v239 = vadd.f32 %v201, %v237
        %v240 = vadd.f32 %v202, %v238
        %s241 = sld [smem:[#allocation6 + $0x9]]
        %v242 = vstv %s241
        %v243 = vmul.f32 %v216, %v242
        %v244 = vmul.f32 %v215, %v242
        %v245 = vadd.f32 %v207, %v243
        %v246 = vadd.f32 %v208, %v244
        %v247 = vrot.slane %v176, 2
        %v248 = vrot.slane %v177, 2
        %v249 = vrot.slane %v178, 2
        %vm250 = vcmp.lt.s32.totalorder %v213, 6
        %v251 = vsel %vm250, %v248, %v249
        %v252 = vsel %vm250, %v247, %v248
        %s253 = sld [smem:[#allocation6 + $0xa]]
        %v254 = vstv %s253
        %v255 = vmul.f32 %v252, %v254
        %v256 = vmul.f32 %v251, %v254
        %v257 = vadd.f32 %v221, %v255
        %v258 = vadd.f32 %v222, %v256
        %s259 = sld [smem:[#allocation6 + $0xb]]
        %v260 = vstv %s259
        %v261 = vmul.f32 %v252, %v260
        %v262 = vmul.f32 %v251, %v260
        %v263 = vadd.f32 %v227, %v261
        %v264 = vadd.f32 %v228, %v262
        %s265 = sld [smem:[#allocation6 + $0xc]]
        %v266 = vstv %s265
        %v267 = vmul.f32 %v252, %v266
        %v268 = vmul.f32 %v251, %v266
        %v269 = vadd.f32 %v233, %v267
        %v270 = vadd.f32 %v234, %v268
        %s271 = sld [smem:[#allocation6 + $0xd]]
        %v272 = vstv %s271
        %v273 = vmul.f32 %v252, %v272
        %v274 = vmul.f32 %v251, %v272
        %v275 = vadd.f32 %v239, %v273
        %v276 = vadd.f32 %v240, %v274
        %s277 = sld [smem:[#allocation6 + $0xe]]
        %v278 = vstv %s277
        %v279 = vmul.f32 %v252, %v278
        %v280 = vmul.f32 %v251, %v278
        %v281 = vadd.f32 %v245, %v279
        %v282 = vadd.f32 %v246, %v280
        %v283 = vrot.slane %v176, 3
        %v284 = vrot.slane %v177, 3
        %v285 = vrot.slane %v178, 3
        %vm286 = vcmp.lt.s32.totalorder %v213, 5
        %v287 = vsel %vm286, %v284, %v285
        %v288 = vsel %vm286, %v283, %v284
        %s289 = sld [smem:[#allocation6 + $0xf]]
        %v290 = vstv %s289
        %v291 = vmul.f32 %v288, %v290
        %v292 = vmul.f32 %v287, %v290
        %v293 = vadd.f32 %v257, %v291
        %v294 = vadd.f32 %v258, %v292
        %s295 = sld [smem:[#allocation6 + $0x10]]
        %v296 = vstv %s295
        %v297 = vmul.f32 %v288, %v296
        %v298 = vmul.f32 %v287, %v296
        %v299 = vadd.f32 %v263, %v297
        %v300 = vadd.f32 %v264, %v298
        %s301 = sld [smem:[#allocation6 + $0x11]]
        %v302 = vstv %s301
        %v303 = vmul.f32 %v288, %v302
        %v304 = vmul.f32 %v287, %v302
        %v305 = vadd.f32 %v269, %v303
        %v306 = vadd.f32 %v270, %v304
        %s307 = sld [smem:[#allocation6 + $0x12]]
        %v308 = vstv %s307
        %v309 = vmul.f32 %v288, %v308
        %v310 = vmul.f32 %v287, %v308
        %v311 = vadd.f32 %v275, %v309
        %v312 = vadd.f32 %v276, %v310
        %s313 = sld [smem:[#allocation6 + $0x13]]
        %v314 = vstv %s313
        %v315 = vmul.f32 %v288, %v314
        %v316 = vmul.f32 %v287, %v314
        %v317 = vadd.f32 %v281, %v315
        %v318 = vadd.f32 %v282, %v316
        %v319 = vrot.slane %v176, 4
        %v320 = vrot.slane %v177, 4
        %v321 = vrot.slane %v178, 4
        %vm322 = vcmp.lt.s32.totalorder %v213, 4
        %v323 = vsel %vm322, %v320, %v321
        %v324 = vsel %vm322, %v319, %v320
        %s325 = sld [smem:[#allocation6 + $0x14]]
        %v326 = vstv %s325
        %v327 = vmul.f32 %v324, %v326
        %v328 = vmul.f32 %v323, %v326
        %v329 = vadd.f32 %v293, %v327
        %v330 = vadd.f32 %v294, %v328
        %s331 = sld [smem:[#allocation6 + $0x15]]
        %v332 = vstv %s331
        %v333 = vmul.f32 %v324, %v332
        %v334 = vmul.f32 %v323, %v332
        %v335 = vadd.f32 %v299, %v333
        %v336 = vadd.f32 %v300, %v334
        %s337 = sld [smem:[#allocation6 + $0x16]]
        %v338 = vstv %s337
        %v339 = vmul.f32 %v324, %v338
        %v340 = vmul.f32 %v323, %v338
        %v341 = vadd.f32 %v305, %v339
        %v342 = vadd.f32 %v306, %v340
        %s343 = sld [smem:[#allocation6 + $0x17]]
        %v344 = vstv %s343
        %v345 = vmul.f32 %v324, %v344
        %v346 = vmul.f32 %v323, %v344
        %v347 = vadd.f32 %v311, %v345
        %v348 = vadd.f32 %v312, %v346
        %s349 = sld [smem:[#allocation6 + $0x18]]
        %v350 = vstv %s349
        %v351 = vmul.f32 %v324, %v350
        %v352 = vmul.f32 %v323, %v350
        %v353 = vadd.f32 %v317, %v351
        %v354 = vadd.f32 %v318, %v352
        %s355 = sadd.s32 0, 24
        %s356 = scalar_lea.vmem %s150, %s355 [#allocation2]
        %v357 = vld [vmem:[%s356] sm:$0xff]
        %v358 = vld [vmem:[%s356 + $0x8] sm:$0xff]
        %v359 = vld [vmem:[%s356 + $0x10] sm:$0xff]
        %s360 = sld [smem:[#allocation6 + $0x19]]
        %v361 = vstv %s360
        %v362 = vmul.f32 %v357, %v361
        %v363 = vmul.f32 %v358, %v361
        %v364 = vadd.f32 %v329, %v362
        %v365 = vadd.f32 %v330, %v363
        %s366 = sld [smem:[#allocation6 + $0x1a]]
        %v367 = vstv %s366
        %v368 = vmul.f32 %v357, %v367
        %v369 = vmul.f32 %v358, %v367
        %v370 = vadd.f32 %v335, %v368
        %v371 = vadd.f32 %v336, %v369
        %s372 = sld [smem:[#allocation6 + $0x1b]]
        %v373 = vstv %s372
        %v374 = vmul.f32 %v357, %v373
        %v375 = vmul.f32 %v358, %v373
        %v376 = vadd.f32 %v341, %v374
        %v377 = vadd.f32 %v342, %v375
        %s378 = sld [smem:[#allocation6 + $0x1c]]
        %v379 = vstv %s378
        %v380 = vmul.f32 %v357, %v379
        %v381 = vmul.f32 %v358, %v379
        %v382 = vadd.f32 %v347, %v380
        %v383 = vadd.f32 %v348, %v381
        %s384 = sld [smem:[#allocation6 + $0x1d]]
        %v385 = vstv %s384
        %v386 = vmul.f32 %v357, %v385
        %v387 = vmul.f32 %v358, %v385
        %v388 = vadd.f32 %v353, %v386
        %v389 = vadd.f32 %v354, %v387
        %v390 = vrot.slane %v357, 1
        %v391 = vrot.slane %v358, 1
        %v392 = vrot.slane %v359, 1
        %v393 = vsel %vm214, %v391, %v392
        %v394 = vsel %vm214, %v390, %v391
        %s395 = sld [smem:[#allocation6 + $0x1e]]
        %v396 = vstv %s395
        %v397 = vmul.f32 %v394, %v396
        %v398 = vmul.f32 %v393, %v396
        %v399 = vadd.f32 %v364, %v397
        %v400 = vadd.f32 %v365, %v398
        %s401 = sld [smem:[#allocation6 + $0x1f]]
        %v402 = vstv %s401
        %v403 = vmul.f32 %v394, %v402
        %v404 = vmul.f32 %v393, %v402
        %v405 = vadd.f32 %v370, %v403
        %v406 = vadd.f32 %v371, %v404
        %s407 = sld [smem:[#allocation6 + $0x20]]
        %v408 = vstv %s407
        %v409 = vmul.f32 %v394, %v408
        %v410 = vmul.f32 %v393, %v408
        %v411 = vadd.f32 %v376, %v409
        %v412 = vadd.f32 %v377, %v410
        %s413 = sld [smem:[#allocation6 + $0x21]]
        %v414 = vstv %s413
        %v415 = vmul.f32 %v394, %v414
        %v416 = vmul.f32 %v393, %v414
        %v417 = vadd.f32 %v382, %v415
        %v418 = vadd.f32 %v383, %v416
        %s419 = sld [smem:[#allocation6 + $0x22]]
        %v420 = vstv %s419
        %v421 = vmul.f32 %v394, %v420
        %v422 = vmul.f32 %v393, %v420
        %v423 = vadd.f32 %v388, %v421
        %v424 = vadd.f32 %v389, %v422
        %v425 = vrot.slane %v357, 2
        %v426 = vrot.slane %v358, 2
        %v427 = vrot.slane %v359, 2
        %v428 = vsel %vm250, %v426, %v427
        %v429 = vsel %vm250, %v425, %v426
        %s430 = sld [smem:[#allocation6 + $0x23]]
        %v431 = vstv %s430
        %v432 = vmul.f32 %v429, %v431
        %v433 = vmul.f32 %v428, %v431
        %v434 = vadd.f32 %v399, %v432
        %v435 = vadd.f32 %v400, %v433
        %s436 = sld [smem:[#allocation6 + $0x24]]
        %v437 = vstv %s436
        %v438 = vmul.f32 %v429, %v437
        %v439 = vmul.f32 %v428, %v437
        %v440 = vadd.f32 %v405, %v438
        %v441 = vadd.f32 %v406, %v439
        %s442 = sld [smem:[#allocation6 + $0x25]]
        %v443 = vstv %s442
        %v444 = vmul.f32 %v429, %v443
        %v445 = vmul.f32 %v428, %v443
        %v446 = vadd.f32 %v411, %v444
        %v447 = vadd.f32 %v412, %v445
        %s448 = sld [smem:[#allocation6 + $0x26]]
        %v449 = vstv %s448
        %v450 = vmul.f32 %v429, %v449
        %v451 = vmul.f32 %v428, %v449
        %v452 = vadd.f32 %v417, %v450
        %v453 = vadd.f32 %v418, %v451
        %s454 = sld [smem:[#allocation6 + $0x27]]
        %v455 = vstv %s454
        %v456 = vmul.f32 %v429, %v455
        %v457 = vmul.f32 %v428, %v455
        %v458 = vadd.f32 %v423, %v456
        %v459 = vadd.f32 %v424, %v457
        %v460 = vrot.slane %v357, 3
        %v461 = vrot.slane %v358, 3
        %v462 = vrot.slane %v359, 3
        %v463 = vsel %vm286, %v461, %v462
        %v464 = vsel %vm286, %v460, %v461
        %s465 = sld [smem:[#allocation6 + $0x28]]
        %v466 = vstv %s465
        %v467 = vmul.f32 %v464, %v466
        %v468 = vmul.f32 %v463, %v466
        %v469 = vadd.f32 %v434, %v467
        %v470 = vadd.f32 %v435, %v468
        %s471 = sld [smem:[#allocation6 + $0x29]]
        %v472 = vstv %s471
        %v473 = vmul.f32 %v464, %v472
        %v474 = vmul.f32 %v463, %v472
        %v475 = vadd.f32 %v440, %v473
        %v476 = vadd.f32 %v441, %v474
        %s477 = sld [smem:[#allocation6 + $0x2a]]
        %v478 = vstv %s477
        %v479 = vmul.f32 %v464, %v478
        %v480 = vmul.f32 %v463, %v478
        %v481 = vadd.f32 %v446, %v479
        %v482 = vadd.f32 %v447, %v480
        %s483 = sld [smem:[#allocation6 + $0x2b]]
        %v484 = vstv %s483
        %v485 = vmul.f32 %v464, %v484
        %v486 = vmul.f32 %v463, %v484
        %v487 = vadd.f32 %v452, %v485
        %v488 = vadd.f32 %v453, %v486
        %s489 = sld [smem:[#allocation6 + $0x2c]]
        %v490 = vstv %s489
        %v491 = vmul.f32 %v464, %v490
        %v492 = vmul.f32 %v463, %v490
        %v493 = vadd.f32 %v458, %v491
        %v494 = vadd.f32 %v459, %v492
        %v495 = vrot.slane %v357, 4
        %v496 = vrot.slane %v358, 4
        %v497 = vrot.slane %v359, 4
        %v498 = vsel %vm322, %v496, %v497
        %v499 = vsel %vm322, %v495, %v496
        %s500 = sld [smem:[#allocation6 + $0x2d]]
        %v501 = vstv %s500
        %v502 = vmul.f32 %v499, %v501
        %v503 = vmul.f32 %v498, %v501
        %v504 = vadd.f32 %v469, %v502
        %v505 = vadd.f32 %v470, %v503
        %s506 = sld [smem:[#allocation6 + $0x2e]]
        %v507 = vstv %s506
        %v508 = vmul.f32 %v499, %v507
        %v509 = vmul.f32 %v498, %v507
        %v510 = vadd.f32 %v475, %v508
        %v511 = vadd.f32 %v476, %v509
        %s512 = sld [smem:[#allocation6 + $0x2f]]
        %v513 = vstv %s512
        %v514 = vmul.f32 %v499, %v513
        %v515 = vmul.f32 %v498, %v513
        %v516 = vadd.f32 %v481, %v514
        %v517 = vadd.f32 %v482, %v515
        %s518 = sld [smem:[#allocation6 + $0x30]]
        %v519 = vstv %s518
        %v520 = vmul.f32 %v499, %v519
        %v521 = vmul.f32 %v498, %v519
        %v522 = vadd.f32 %v487, %v520
        %v523 = vadd.f32 %v488, %v521
        %s524 = sld [smem:[#allocation6 + $0x31]]
        %v525 = vstv %s524
        %v526 = vmul.f32 %v499, %v525
        %v527 = vmul.f32 %v498, %v525
        %v528 = vadd.f32 %v493, %v526
        %v529 = vadd.f32 %v494, %v527
        %s530 = sadd.s32 0, 48
        %s531 = scalar_lea.vmem %s150, %s530 [#allocation2]
        %v532 = vld [vmem:[%s531] sm:$0xff]
        %v533 = vld [vmem:[%s531 + $0x8] sm:$0xff]
        %v534 = vld [vmem:[%s531 + $0x10] sm:$0xff]
        %s535 = sld [smem:[#allocation6 + $0x32]]
        %v536 = vstv %s535
        %v537 = vmul.f32 %v532, %v536
        %v538 = vmul.f32 %v533, %v536
        %v539 = vadd.f32 %v504, %v537
        %v540 = vadd.f32 %v505, %v538
        %s541 = sld [smem:[#allocation6 + $0x33]]
        %v542 = vstv %s541
        %v543 = vmul.f32 %v532, %v542
        %v544 = vmul.f32 %v533, %v542
        %v545 = vadd.f32 %v510, %v543
        %v546 = vadd.f32 %v511, %v544
        %s547 = sld [smem:[#allocation6 + $0x34]]
        %v548 = vstv %s547
        %v549 = vmul.f32 %v532, %v548
        %v550 = vmul.f32 %v533, %v548
        %v551 = vadd.f32 %v516, %v549
        %v552 = vadd.f32 %v517, %v550
        %s553 = sld [smem:[#allocation6 + $0x35]]
        %v554 = vstv %s553
        %v555 = vmul.f32 %v532, %v554
        %v556 = vmul.f32 %v533, %v554
        %v557 = vadd.f32 %v522, %v555
        %v558 = vadd.f32 %v523, %v556
        %s559 = sld [smem:[#allocation6 + $0x36]]
        %v560 = vstv %s559
        %v561 = vmul.f32 %v532, %v560
        %v562 = vmul.f32 %v533, %v560
        %v563 = vadd.f32 %v528, %v561
        %v564 = vadd.f32 %v529, %v562
        %v565 = vrot.slane %v532, 1
        %v566 = vrot.slane %v533, 1
        %v567 = vrot.slane %v534, 1
        %v568 = vsel %vm214, %v566, %v567
        %v569 = vsel %vm214, %v565, %v566
        %s570 = sld [smem:[#allocation6 + $0x37]]
        %v571 = vstv %s570
        %v572 = vmul.f32 %v569, %v571
        %v573 = vmul.f32 %v568, %v571
        %v574 = vadd.f32 %v539, %v572
        %v575 = vadd.f32 %v540, %v573
        %s576 = sld [smem:[#allocation6 + $0x38]]
        %v577 = vstv %s576
        %v578 = vmul.f32 %v569, %v577
        %v579 = vmul.f32 %v568, %v577
        %v580 = vadd.f32 %v545, %v578
        %v581 = vadd.f32 %v546, %v579
        %s582 = sld [smem:[#allocation6 + $0x39]]
        %v583 = vstv %s582
        %v584 = vmul.f32 %v569, %v583
        %v585 = vmul.f32 %v568, %v583
        %v586 = vadd.f32 %v551, %v584
        %v587 = vadd.f32 %v552, %v585
        %s588 = sld [smem:[#allocation6 + $0x3a]]
        %v589 = vstv %s588
        %v590 = vmul.f32 %v569, %v589
        %v591 = vmul.f32 %v568, %v589
        %v592 = vadd.f32 %v557, %v590
        %v593 = vadd.f32 %v558, %v591
        %s594 = sld [smem:[#allocation6 + $0x3b]]
        %v595 = vstv %s594
        %v596 = vmul.f32 %v569, %v595
        %v597 = vmul.f32 %v568, %v595
        %v598 = vadd.f32 %v563, %v596
        %v599 = vadd.f32 %v564, %v597
        %v600 = vrot.slane %v532, 2
        %v601 = vrot.slane %v533, 2
        %v602 = vrot.slane %v534, 2
        %v603 = vsel %vm250, %v601, %v602
        %v604 = vsel %vm250, %v600, %v601
        %s605 = sld [smem:[#allocation6 + $0x3c]]
        %v606 = vstv %s605
        %v607 = vmul.f32 %v604, %v606
        %v608 = vmul.f32 %v603, %v606
        %v609 = vadd.f32 %v574, %v607
        %v610 = vadd.f32 %v575, %v608
        %s611 = sld [smem:[#allocation6 + $0x3d]]
        %v612 = vstv %s611
        %v613 = vmul.f32 %v604, %v612
        %v614 = vmul.f32 %v603, %v612
        %v615 = vadd.f32 %v580, %v613
        %v616 = vadd.f32 %v581, %v614
        %s617 = sld [smem:[#allocation6 + $0x3e]]
        %v618 = vstv %s617
        %v619 = vmul.f32 %v604, %v618
        %v620 = vmul.f32 %v603, %v618
        %v621 = vadd.f32 %v586, %v619
        %v622 = vadd.f32 %v587, %v620
        %s623 = sld [smem:[#allocation6 + $0x3f]]
        %v624 = vstv %s623
        %v625 = vmul.f32 %v604, %v624
        %v626 = vmul.f32 %v603, %v624
        %v627 = vadd.f32 %v592, %v625
        %v628 = vadd.f32 %v593, %v626
        %s629 = sld [smem:[#allocation6 + $0x40]]
        %v630 = vstv %s629
        %v631 = vmul.f32 %v604, %v630
        %v632 = vmul.f32 %v603, %v630
        %v633 = vadd.f32 %v598, %v631
        %v634 = vadd.f32 %v599, %v632
        %v635 = vrot.slane %v532, 3
        %v636 = vrot.slane %v533, 3
        %v637 = vrot.slane %v534, 3
        %v638 = vsel %vm286, %v636, %v637
        %v639 = vsel %vm286, %v635, %v636
        %s640 = sld [smem:[#allocation6 + $0x41]]
        %v641 = vstv %s640
        %v642 = vmul.f32 %v639, %v641
        %v643 = vmul.f32 %v638, %v641
        %v644 = vadd.f32 %v609, %v642
        %v645 = vadd.f32 %v610, %v643
        %s646 = sld [smem:[#allocation6 + $0x42]]
        %v647 = vstv %s646
        %v648 = vmul.f32 %v639, %v647
        %v649 = vmul.f32 %v638, %v647
        %v650 = vadd.f32 %v615, %v648
        %v651 = vadd.f32 %v616, %v649
        %s652 = sld [smem:[#allocation6 + $0x43]]
        %v653 = vstv %s652
        %v654 = vmul.f32 %v639, %v653
        %v655 = vmul.f32 %v638, %v653
        %v656 = vadd.f32 %v621, %v654
        %v657 = vadd.f32 %v622, %v655
        %s658 = sld [smem:[#allocation6 + $0x44]]
        %v659 = vstv %s658
        %v660 = vmul.f32 %v639, %v659
        %v661 = vmul.f32 %v638, %v659
        %v662 = vadd.f32 %v627, %v660
        %v663 = vadd.f32 %v628, %v661
        %s664 = sld [smem:[#allocation6 + $0x45]]
        %v665 = vstv %s664
        %v666 = vmul.f32 %v639, %v665
        %v667 = vmul.f32 %v638, %v665
        %v668 = vadd.f32 %v633, %v666
        %v669 = vadd.f32 %v634, %v667
        %v670 = vrot.slane %v532, 4
        %v671 = vrot.slane %v533, 4
        %v672 = vrot.slane %v534, 4
        %v673 = vsel %vm322, %v671, %v672
        %v674 = vsel %vm322, %v670, %v671
        %s675 = sld [smem:[#allocation6 + $0x46]]
        %v676 = vstv %s675
        %v677 = vmul.f32 %v674, %v676
        %v678 = vmul.f32 %v673, %v676
        %v679 = vadd.f32 %v644, %v677
        %v680 = vadd.f32 %v645, %v678
        %s681 = sld [smem:[#allocation6 + $0x47]]
        %v682 = vstv %s681
        %v683 = vmul.f32 %v674, %v682
        %v684 = vmul.f32 %v673, %v682
        %v685 = vadd.f32 %v650, %v683
        %v686 = vadd.f32 %v651, %v684
        %s687 = sld [smem:[#allocation6 + $0x48]]
        %v688 = vstv %s687
        %v689 = vmul.f32 %v674, %v688
        %v690 = vmul.f32 %v673, %v688
        %v691 = vadd.f32 %v656, %v689
        %v692 = vadd.f32 %v657, %v690
        %s693 = sld [smem:[#allocation6 + $0x49]]
        %v694 = vstv %s693
        %v695 = vmul.f32 %v674, %v694
        %v696 = vmul.f32 %v673, %v694
        %v697 = vadd.f32 %v662, %v695
        %v698 = vadd.f32 %v663, %v696
        %s699 = sld [smem:[#allocation6 + $0x4a]]
        %v700 = vstv %s699
        %v701 = vmul.f32 %v674, %v700
        %v702 = vmul.f32 %v673, %v700
        %v703 = vadd.f32 %v668, %v701
        %v704 = vadd.f32 %v669, %v702
        %s705 = sadd.s32 0, 72
        %s706 = scalar_lea.vmem %s150, %s705 [#allocation2]
        %v707 = vld [vmem:[%s706] sm:$0xff]
        %v708 = vld [vmem:[%s706 + $0x8] sm:$0xff]
        %v709 = vld [vmem:[%s706 + $0x10] sm:$0xff]
        %s710 = sld [smem:[#allocation6 + $0x4b]]
        %v711 = vstv %s710
        %v712 = vmul.f32 %v707, %v711
        %v713 = vmul.f32 %v708, %v711
        %v714 = vadd.f32 %v679, %v712
        %v715 = vadd.f32 %v680, %v713
        %s716 = sld [smem:[#allocation6 + $0x4c]]
        %v717 = vstv %s716
        %v718 = vmul.f32 %v707, %v717
        %v719 = vmul.f32 %v708, %v717
        %v720 = vadd.f32 %v685, %v718
        %v721 = vadd.f32 %v686, %v719
        %s722 = sld [smem:[#allocation6 + $0x4d]]
        %v723 = vstv %s722
        %v724 = vmul.f32 %v707, %v723
        %v725 = vmul.f32 %v708, %v723
        %v726 = vadd.f32 %v691, %v724
        %v727 = vadd.f32 %v692, %v725
        %s728 = sld [smem:[#allocation6 + $0x4e]]
        %v729 = vstv %s728
        %v730 = vmul.f32 %v707, %v729
        %v731 = vmul.f32 %v708, %v729
        %v732 = vadd.f32 %v697, %v730
        %v733 = vadd.f32 %v698, %v731
        %s734 = sld [smem:[#allocation6 + $0x4f]]
        %v735 = vstv %s734
        %v736 = vmul.f32 %v707, %v735
        %v737 = vmul.f32 %v708, %v735
        %v738 = vadd.f32 %v703, %v736
        %v739 = vadd.f32 %v704, %v737
        %v740 = vrot.slane %v707, 1
        %v741 = vrot.slane %v708, 1
        %v742 = vrot.slane %v709, 1
        %v743 = vsel %vm214, %v741, %v742
        %v744 = vsel %vm214, %v740, %v741
        %s745 = sld [smem:[#allocation6 + $0x50]]
        %v746 = vstv %s745
        %v747 = vmul.f32 %v744, %v746
        %v748 = vmul.f32 %v743, %v746
        %v749 = vadd.f32 %v714, %v747
        %v750 = vadd.f32 %v715, %v748
        %s751 = sld [smem:[#allocation6 + $0x51]]
        %v752 = vstv %s751
        %v753 = vmul.f32 %v744, %v752
        %v754 = vmul.f32 %v743, %v752
        %v755 = vadd.f32 %v720, %v753
        %v756 = vadd.f32 %v721, %v754
        %s757 = sld [smem:[#allocation6 + $0x52]]
        %v758 = vstv %s757
        %v759 = vmul.f32 %v744, %v758
        %v760 = vmul.f32 %v743, %v758
        %v761 = vadd.f32 %v726, %v759
        %v762 = vadd.f32 %v727, %v760
        %s763 = sld [smem:[#allocation6 + $0x53]]
        %v764 = vstv %s763
        %v765 = vmul.f32 %v744, %v764
        %v766 = vmul.f32 %v743, %v764
        %v767 = vadd.f32 %v732, %v765
        %v768 = vadd.f32 %v733, %v766
        %s769 = sld [smem:[#allocation6 + $0x54]]
        %v770 = vstv %s769
        %v771 = vmul.f32 %v744, %v770
        %v772 = vmul.f32 %v743, %v770
        %v773 = vadd.f32 %v738, %v771
        %v774 = vadd.f32 %v739, %v772
        %v775 = vrot.slane %v707, 2
        %v776 = vrot.slane %v708, 2
        %v777 = vrot.slane %v709, 2
        %v778 = vsel %vm250, %v776, %v777
        %v779 = vsel %vm250, %v775, %v776
        %s780 = sld [smem:[#allocation6 + $0x55]]
        %v781 = vstv %s780
        %v782 = vmul.f32 %v779, %v781
        %v783 = vmul.f32 %v778, %v781
        %v784 = vadd.f32 %v749, %v782
        %v785 = vadd.f32 %v750, %v783
        %s786 = sld [smem:[#allocation6 + $0x56]]
        %v787 = vstv %s786
        %v788 = vmul.f32 %v779, %v787
        %v789 = vmul.f32 %v778, %v787
        %v790 = vadd.f32 %v755, %v788
        %v791 = vadd.f32 %v756, %v789
        %s792 = sld [smem:[#allocation6 + $0x57]]
        %v793 = vstv %s792
        %v794 = vmul.f32 %v779, %v793
        %v795 = vmul.f32 %v778, %v793
        %v796 = vadd.f32 %v761, %v794
        %v797 = vadd.f32 %v762, %v795
        %s798 = sld [smem:[#allocation6 + $0x58]]
        %v799 = vstv %s798
        %v800 = vmul.f32 %v779, %v799
        %v801 = vmul.f32 %v778, %v799
        %v802 = vadd.f32 %v767, %v800
        %v803 = vadd.f32 %v768, %v801
        %s804 = sld [smem:[#allocation6 + $0x59]]
        %v805 = vstv %s804
        %v806 = vmul.f32 %v779, %v805
        %v807 = vmul.f32 %v778, %v805
        %v808 = vadd.f32 %v773, %v806
        %v809 = vadd.f32 %v774, %v807
        %v810 = vrot.slane %v707, 3
        %v811 = vrot.slane %v708, 3
        %v812 = vrot.slane %v709, 3
        %v813 = vsel %vm286, %v811, %v812
        %v814 = vsel %vm286, %v810, %v811
        %s815 = sld [smem:[#allocation6 + $0x5a]]
        %v816 = vstv %s815
        %v817 = vmul.f32 %v814, %v816
        %v818 = vmul.f32 %v813, %v816
        %v819 = vadd.f32 %v784, %v817
        %v820 = vadd.f32 %v785, %v818
        %s821 = sld [smem:[#allocation6 + $0x5b]]
        %v822 = vstv %s821
        %v823 = vmul.f32 %v814, %v822
        %v824 = vmul.f32 %v813, %v822
        %v825 = vadd.f32 %v790, %v823
        %v826 = vadd.f32 %v791, %v824
        %s827 = sld [smem:[#allocation6 + $0x5c]]
        %v828 = vstv %s827
        %v829 = vmul.f32 %v814, %v828
        %v830 = vmul.f32 %v813, %v828
        %v831 = vadd.f32 %v796, %v829
        %v832 = vadd.f32 %v797, %v830
        %s833 = sld [smem:[#allocation6 + $0x5d]]
        %v834 = vstv %s833
        %v835 = vmul.f32 %v814, %v834
        %v836 = vmul.f32 %v813, %v834
        %v837 = vadd.f32 %v802, %v835
        %v838 = vadd.f32 %v803, %v836
        %s839 = sld [smem:[#allocation6 + $0x5e]]
        %v840 = vstv %s839
        %v841 = vmul.f32 %v814, %v840
        %v842 = vmul.f32 %v813, %v840
        %v843 = vadd.f32 %v808, %v841
        %v844 = vadd.f32 %v809, %v842
        %v845 = vrot.slane %v707, 4
        %v846 = vrot.slane %v708, 4
        %v847 = vrot.slane %v709, 4
        %v848 = vsel %vm322, %v846, %v847
        %v849 = vsel %vm322, %v845, %v846
        %s850 = sld [smem:[#allocation6 + $0x5f]]
        %v851 = vstv %s850
        %v852 = vmul.f32 %v849, %v851
        %v853 = vmul.f32 %v848, %v851
        %v854 = vadd.f32 %v819, %v852
        %v855 = vadd.f32 %v820, %v853
        %s856 = sld [smem:[#allocation6 + $0x60]]
        %v857 = vstv %s856
        %v858 = vmul.f32 %v849, %v857
        %v859 = vmul.f32 %v848, %v857
        %v860 = vadd.f32 %v825, %v858
        %v861 = vadd.f32 %v826, %v859
        %s862 = sld [smem:[#allocation6 + $0x61]]
        %v863 = vstv %s862
        %v864 = vmul.f32 %v849, %v863
        %v865 = vmul.f32 %v848, %v863
        %v866 = vadd.f32 %v831, %v864
        %v867 = vadd.f32 %v832, %v865
        %s868 = sld [smem:[#allocation6 + $0x62]]
        %v869 = vstv %s868
        %v870 = vmul.f32 %v849, %v869
        %v871 = vmul.f32 %v848, %v869
        %v872 = vadd.f32 %v837, %v870
        %v873 = vadd.f32 %v838, %v871
        %s874 = sld [smem:[#allocation6 + $0x63]]
        %v875 = vstv %s874
        %v876 = vmul.f32 %v849, %v875
        %v877 = vmul.f32 %v848, %v875
        %v878 = vadd.f32 %v843, %v876
        %v879 = vadd.f32 %v844, %v877
        %880 = vrot.lane.b32.xlu0 %v854, 2
        %v881 = vpop.permute.xlu0 %880
        %882 = vrot.lane.b32.xlu0 %v855, 2
        %v883 = vpop.permute.xlu0 %882
        %v884 = vadd.f32 %v881, 0.0
        %v885 = vadd.f32 %v883, 0.0
        %886 = vrot.lane.b32.xlu0 %v860, 1
        %v887 = vpop.permute.xlu0 %886
        %888 = vrot.lane.b32.xlu0 %v861, 1
        %v889 = vpop.permute.xlu0 %888
        %v890 = vadd.f32 %v884, %v887
        %v891 = vadd.f32 %v885, %v889
        %v892 = vadd.f32 %v890, %v866
        %v893 = vadd.f32 %v891, %v867
        %894 = vrot.lane.b32.xlu0 %v872, 127
        %v895 = vpop.permute.xlu0 %894
        %896 = vrot.lane.b32.xlu0 %v873, 127
        %v897 = vpop.permute.xlu0 %896
        %v898 = vadd.f32 %v892, %v895
        %v899 = vadd.f32 %v893, %v897
        %900 = vrot.lane.b32.xlu0 %v878, 126
        %v901 = vpop.permute.xlu0 %900
        %902 = vrot.lane.b32.xlu0 %v879, 126
        %v903 = vpop.permute.xlu0 %902
        %v904 = vadd.f32 %v898, %v901
        %v905 = vadd.f32 %v899, %v903
        %906 = vst [vmem:[%s175] sm:$0xff] %v904
        %907 = vst [vmem:[%s175 + $0x8] sm:$0xff] %v905
        %s908 = sand.u32 %s75, 1
        %s909 = scalar_lea.sflag [#allocation4], %s908
        %s910 = sand.u32 %s75, 1
        %s911 = smul.addr %s910, 16
        %s912 = scalar_lea.vmem [#allocation7], %s911
        // Predicated region
        $region37: #{tpu_custom_call.1} parent=27 // pred_check
          %p913 = pneg %p85
        $region38: #{tpu_custom_call.1} parent=27 // pred_check_branch
          %915 = sbr.rel (%p913) target = $region40
        $region39: #{tpu_custom_call.1} parent=27 // pred_region
          %s917 = ssub.s32 256, 256
          %918 = vsyncadd %s909, %s917
          %s919 = smul.addr %s20, 2
          %s920 = smul.addr %s919, 128
          %s921 = scalar_lea.hbm %s2, %s920
          %s922 = sshll.u32 %s912, 4
          %s923 = int_to_ptr.vmem [resolvable:$true] %s922
          %928 = dma.vmem_to_hbm [thread:$0]  %s923, 256, %s921, %s909, 128, 128, 8
        $region40: #{tpu_custom_call.1} parent=27 // pred_fallthru
          _
      $region28: #{tpu_custom_call.1} parent=5 // pred_fallthru
        _
      %p929 = scmp.le.s32.totalorder 2, %s15
      // Predicated region
      $region41: #{tpu_custom_call.1} parent=5 // pred_check
        %p930 = pneg %p929
      $region42: #{tpu_custom_call.1} parent=5 // pred_check_branch
        %932 = sbr.rel (%p930) target = $region44
      $region43: #{tpu_custom_call.1} parent=5 // pred_region
        %s933 = ssub.s32 %s15, 2
        // Predicated region
        $region45: #{tpu_custom_call.1} parent=43 // pred_check
          %p934 = pneg %p91
        $region46: #{tpu_custom_call.1} parent=43 // pred_check_branch
          %936 = sbr.rel (%p934) target = $region48
        $region47: #{tpu_custom_call.1} parent=43 // pred_region
          %s937 = sand.u32 %s76, 1
          %s938 = scalar_lea.sflag [#allocation4], %s937
          %s939 = sand.u32 %s76, 1
          %s940 = smul.addr %s939, 16
          %s941 = scalar_lea.vmem [#allocation7], %s940
          %942 = dma.done %s938, 256
        $region48: #{tpu_custom_call.1} parent=43 // pred_fallthru
          _
      $region44: #{tpu_custom_call.1} parent=5 // pred_fallthru
        _
    $region6: #{tpu_custom_call.1} parent=1 // loop_footer
      %s19 = sadd.s32 1, %s15
    $region7: #{tpu_custom_call.1} parent=1 // loop_footer_branch
      %14 = sbr.rel target = $region3
    $region8: #{tpu_custom_call.1} parent=1 // loop_exit
      _
    %943 = vsyncpa [#allocation3], 1
    %s944 = scalar_lea.sflag [#allocation3], 1
    %945 = vsyncpa %s944, 1
    %946 = vsyncpa [#allocation4], 1
    %s947 = scalar_lea.sflag [#allocation4], 1
    %948 = vsyncpa %s947, 1
    %949 = vsyncpa [#allocation5], 1
    %s950 = scalar_lea.sflag [#allocation5], 1
    %951 = vsyncpa %s950, 1

</llo_original>
